<compile_context>
chip_gen: v6e
topology: v6e:2x2x1
jax: 0.10.0
libtpu: 0.0.40
codegen_flags: <defaults>
</compile_context>

<pallas_src>
import functools

import jax
import jax.numpy as jnp
from jax.experimental import pallas as pl
from jax.experimental.pallas import tpu as pltpu

# ---- small synthetic config (stand-ins for the real CLIP dims) -------------
PATCH = 4          # vit_patch_size
IN_SIZE = 32       # stands in for 768 (intermediate ViT width, feats_idx != 'final')
IN_DIM = 16        # stands in for 256 (obj_proj output dim)
C_CLIP = 24        # stands in for 512 (CLIP visual embedding dim)
NUM_CLASSES = 8    # number of class names
CONV_K = 3         # obj_proj kernel size


def init_params(key):
    ks = jax.random.split(key, 10)
    s = 0.02
    p = {}
    # synthetic backbone (patch embedding stand-ins)
    p["w_inter"] = s * jax.random.normal(ks[0], (PATCH * PATCH * 3, IN_SIZE), jnp.float32)
    p["b_inter"] = s * jax.random.normal(ks[1], (IN_SIZE,), jnp.float32)
    p["cls_token"] = s * jax.random.normal(ks[2], (1, 1, IN_SIZE), jnp.float32)
    p["w_feat"] = s * jax.random.normal(ks[3], (PATCH * PATCH * 3, C_CLIP), jnp.float32)
    p["b_feat"] = s * jax.random.normal(ks[4], (C_CLIP,), jnp.float32)
    # obj_proj = Conv2d(IN_SIZE, IN_DIM, 3x3, padding=1, padding_mode='replicate')
    #   stored as (kh*kw, Cin, Cout)
    p["w_obj"] = s * jax.random.normal(ks[5], (CONV_K * CONV_K, IN_SIZE, IN_DIM), jnp.float32)
    p["b_obj"] = s * jax.random.normal(ks[6], (1, IN_DIM), jnp.float32)
    # bkg_decoder = Conv2d(IN_SIZE, 1, 1x1)
    p["w_bkg"] = s * jax.random.normal(ks[7], (IN_SIZE, 1), jnp.float32)
    p["b_bkg"] = s * jax.random.normal(ks[8], (1, 1), jnp.float32)
    # decode_head.cls_seg ~ 1x1 conv C_CLIP -> NUM_CLASSES
    p["w_cls"] = s * jax.random.normal(ks[9], (C_CLIP, NUM_CLASSES), jnp.float32)
    p["b_cls"] = jnp.zeros((1, NUM_CLASSES), jnp.float32)
    return p


def synthetic_clip_backbone(x_nchw, p):
    """Stand-in for self.clip_backbone(img, return_feat=True) + ln2 hook."""
    B, Cin, H, W = x_nchw.shape
    h, w = H // PATCH, W // PATCH
    patches = x_nchw.reshape(B, Cin, h, PATCH, w, PATCH)
    patches = patches.transpose(0, 2, 4, 3, 5, 1).reshape(B, h * w, PATCH * PATCH * Cin)
    # hooked intermediate tokens ('clip_inter'), with a CLS token prepended
    inter = patches @ p["w_inter"] + p["b_inter"]                 # (B, N, IN_SIZE)
    cls_tok = jnp.broadcast_to(p["cls_token"], (B, 1, IN_SIZE))
    inter_tokens = jnp.concatenate([cls_tok, inter], axis=1)      # (B, 1+N, IN_SIZE)
    # final CLIP visual feature map ("feat" returned by get_clip_map)
    feat_flat = patches @ p["w_feat"] + p["b_feat"]               # (B, N, C_CLIP)
    return feat_flat, inter_tokens, (h, w)


# ---------------------------- Pallas kernels --------------------------------
def _proj_bkg_kernel(xf_ref, wobj_ref, bobj_ref, wbkg_ref, bbkg_ref,
                     pn_ref, preds_ref, *, h, w, pad, kk):
    """obj_proj 3x3 conv (single K-stacked matmul on shifted windows) + L2 norm,
    fused with bkg_decoder (L2 norm + 1x1 conv) on the resident centre tap.

    Works on 'padded-row' tokens: L = h*(w+2*pad) rows; every tap (di, dj) is the
    contiguous row window starting at di*(w+2*pad)+dj, so no in-kernel reshape
    or gather is needed.  The 2*pad junk columns per row are dropped in the
    wrapper (cheap XLA slice on a tiny tensor)."""
    wp = w + 2 * pad
    L = h * wp
    xf = xf_ref[0]                                            # (n_rows, IN_SIZE) f32
    slabs = []
    for di in range(kk):
        for dj in range(kk):
            o = di * wp + dj
            slabs.append(xf[o:o + L, :])                      # (L, IN_SIZE) f32
    # one fused MXU matmul, K = kk*kk*IN_SIZE, bf16 operands, f32 accumulation
    x_cat = jnp.concatenate([s.astype(jnp.bfloat16) for s in slabs], axis=-1)
    acc = jnp.dot(x_cat, wobj_ref[...], preferred_element_type=jnp.float32)
    acc = acc + bobj_ref[...]                                 # (L, IN_DIM)
    inv = jax.lax.rsqrt(jnp.maximum(jnp.sum(acc * acc, axis=-1, keepdims=True), 1e-24))
    pn_ref[0] = (acc * inv).astype(pn_ref.dtype)              # normalized proj feats

    # bkg_decoder(clip_feats / ||clip_feats||): centre tap == unpadded feats
    fv = slabs[(kk * kk) // 2]                                # (L, IN_SIZE) f32
    invf = jax.lax.rsqrt(jnp.maximum(jnp.sum(fv * fv, axis=-1, keepdims=True), 1e-24))
    fn = fv * invf
    preds_ref[0] = jax.lax.dot_general(                       # (1, L): lane-dense
        wbkg_ref[...], fn, dimension_numbers=(((1,), (1,)), ((), ())),
        preferred_element_type=jnp.float32) + bbkg_ref[...]


def _corr_pool_cls_kernel(pnq_ref, pnk_ref, feat_ref, wcls_ref, bcls_ref,
                          corrs_ref, logit_ref, *, mask_th):
    """Gram matrix (corrs) for a query-row tile + mask/relu + weighted pool over
    the CLIP feature map + cls_seg 1x1 conv, emitted as (NUM_CLASSES, TQ)."""
    s = jax.lax.dot_general(pnq_ref[0], pnk_ref[0],
                            dimension_numbers=(((1,), (1,)), ((), ())),
                            preferred_element_type=jnp.float32)          # (TQ, N)
    corrs_ref[0] = s                                                     # raw corrs out
    # 'corrs[corrs < mask_th] = 0' followed by 'corrs[corrs < 0] = 0' composes
    # into a single select with threshold max(mask_th, 0).
    th = max(float(mask_th), 0.0) if mask_th else 0.0
    c = jnp.where(s < th, 0.0, s)                                        # f32
    refined = jnp.dot(c.astype(jnp.bfloat16), feat_ref[0],
                      preferred_element_type=jnp.float32)                # (TQ, C_CLIP)
    norm = jnp.sum(c, axis=-1, keepdims=True)                            # (TQ, 1) f32
    refined = refined * pl.reciprocal(norm + 1e-6, approx=True)
    logit_ref[0] = jax.lax.dot_general(                                  # (K, TQ)
        wcls_ref[...], refined, dimension_numbers=(((1,), (1,)), ((), ())),
        preferred_element_type=jnp.float32) + bcls_ref[...]


# ------------------------------ wrapper --------------------------------------
def clip_dinoiser_forward(x_nchw, p, *, mask_th=None, apply_found=False,
                          found_th=0.5, certainty_th=0.9):
    B = x_nchw.shape[0]
    feat_flat, inter_tokens, (h, w) = synthetic_clip_backbone(x_nchw, p)
    N = h * w
    pad = CONV_K // 2
    wp = w + 2 * pad
    L = h * wp                                                # padded-row token count

    # feats_idx != 'final': use hooked intermediate feats, drop CLS token
    clip_inter = inter_tokens[:, 1:, :].reshape(B, h, w, IN_SIZE)         # NHWC

    # replicate padding + token-major flatten; CONV_K-1 dummy trailing rows keep
    # every shifted window the same static length inside the kernel.
    xpad = jnp.pad(clip_inter, ((0, 0), (pad, pad), (pad, pad), (0, 0)), mode="edge")
    xflat = xpad.reshape(B, (h + 2 * pad) * wp, IN_SIZE)
    xflat = jnp.pad(xflat, ((0, 0), (0, CONV_K - 1), (0, 0)), mode="edge")
    n_rows = xflat.shape[1]

    w_obj_flat = p["w_obj"].reshape(CONV_K * CONV_K * IN_SIZE, IN_DIM).astype(jnp.bfloat16)
    w_bkg_t = p["w_bkg"].T                                                 # (1, IN_SIZE)

    pn_pad, preds_pad = pl.pallas_call(
        functools.partial(_proj_bkg_kernel, h=h, w=w, pad=pad, kk=CONV_K),
        out_shape=(jax.ShapeDtypeStruct((B, L, IN_DIM), jnp.bfloat16),
                   jax.ShapeDtypeStruct((B, 1, L), jnp.float32)),
        grid_spec=pltpu.PrefetchScalarGridSpec(
            num_scalar_prefetch=0, grid=(B,),
            in_specs=[
                pl.BlockSpec((1, n_rows, IN_SIZE), lambda b: (b, 0, 0)),
                pl.BlockSpec((CONV_K * CONV_K * IN_SIZE, IN_DIM), lambda b: (0, 0)),
                pl.BlockSpec((1, IN_DIM), lambda b: (0, 0)),
                pl.BlockSpec((1, IN_SIZE), lambda b: (0, 0)),
                pl.BlockSpec((1, 1), lambda b: (0, 0)),
            ],
            out_specs=(pl.BlockSpec((1, L, IN_DIM), lambda b: (b, 0, 0)),
                       pl.BlockSpec((1, 1, L), lambda b: (b, 0, 0))),
        ),
        compiler_params=pltpu.CompilerParams(dimension_semantics=("parallel",)),
    )(xflat, w_obj_flat, p["b_obj"], w_bkg_t, p["b_bkg"])

    # drop the 2*pad horizontal-padding columns (tiny XLA slice between kernels)
    pn = pn_pad.reshape(B, h, wp, IN_DIM)[:, :, :w, :].reshape(B, N, IN_DIM)   # bf16
    preds_nchw = preds_pad.reshape(B, 1, h, wp)[:, :, :, :w]                   # (B,1,h,w)
    # F.interpolate(preds, (hf, wf), bilinear): here (hf, wf) == (h, w) -> identity.

    # --- fused corrs (Gram) + thresholded weighted pool + cls_seg, query-tiled
    TQ = 128 if (N % 128 == 0) else N
    nq = N // TQ
    feat_bf16 = feat_flat.astype(jnp.bfloat16)                             # (B, N, C_CLIP)
    w_cls_t = p["w_cls"].T                                                 # (K, C_CLIP)
    b_cls_col = p["b_cls"].reshape(NUM_CLASSES, 1)

    corrs, logits = pl.pallas_call(
        functools.partial(_corr_pool_cls_kernel, mask_th=mask_th),
        out_shape=(jax.ShapeDtypeStruct((B, N, N), jnp.float32),
                   jax.ShapeDtypeStruct((B, NUM_CLASSES, N), jnp.float32)),
        grid_spec=pltpu.PrefetchScalarGridSpec(
            num_scalar_prefetch=0, grid=(B, nq),
            in_specs=[
                pl.BlockSpec((1, TQ, IN_DIM), lambda b, q: (b, q, 0)),     # query rows
                pl.BlockSpec((1, N, IN_DIM), lambda b, q: (b, 0, 0)),      # all keys
                pl.BlockSpec((1, N, C_CLIP), lambda b, q: (b, 0, 0)),      # clipmap
                pl.BlockSpec((NUM_CLASSES, C_CLIP), lambda b, q: (0, 0)),
                pl.BlockSpec((NUM_CLASSES, 1), lambda b, q: (0, 0)),
            ],
            out_specs=(pl.BlockSpec((1, TQ, N), lambda b, q: (b, q, 0)),
                       pl.BlockSpec((1, NUM_CLASSES, TQ), lambda b, q: (b, 0, q))),
        ),
        compiler_params=pltpu.CompilerParams(
            dimension_semantics=("parallel", "parallel")),
    )(pn, pn, feat_bf16, w_cls_t, b_cls_col)

    output = logits.reshape(B, NUM_CLASSES, h, w)                          # NCHW, free

    if apply_found:  # glue-level elementwise post-processing (same semantics)
        soft_found = jax.nn.sigmoid(preds_nchw)
        r_hard_found = soft_found.reshape(-1) > found_th
        uncertain = (jnp.max(output, axis=1) < certainty_th).reshape(-1)
        cond = uncertain & (~r_hard_found)
        flat = output.reshape(1, NUM_CLASSES, -1)
        flat = flat.at[:, 0, :].set(jnp.where(cond, 1.0, flat[:, 0, :]))
        output = flat.reshape(output.shape)

    return output, preds_nchw, corrs


if __name__ == "__main__":
    key = jax.random.PRNGKey(0)
    kx, kp = jax.random.split(key)
    x = jax.random.normal(kx, (2, 3, 16, 16), jnp.float32)   # NCHW, like PyTorch
    params = init_params(kp)

    fwd = jax.jit(functools.partial(clip_dinoiser_forward,
                                    mask_th=None, apply_found=False))
    output, preds, corrs = fwd(x, params)
    jax.block_until_ready(output)

    h = x.shape[2] // PATCH
    w = x.shape[3] // PATCH
    assert output.shape == (2, NUM_CLASSES, h, w)
    assert preds.shape == (2, 1, h, w)
    assert corrs.shape == (2, h * w, h * w)
    assert bool(jnp.all(jnp.isfinite(output)))
    print("KERNEL_OK")
</pallas_src>

<mosaic_0001>
module attributes {stable_mosaic.version = 11 : i64} {
  func.func @_proj_bkg_kernel(%arg0: i32, %arg1: memref<1x38x32xf32, #tpu.memory_space<vmem>>, %arg2: memref<288x16xbf16, #tpu.memory_space<vmem>>, %arg3: memref<1x16xf32, #tpu.memory_space<vmem>>, %arg4: memref<1x32xf32, #tpu.memory_space<vmem>>, %arg5: memref<1x1xf32, #tpu.memory_space<vmem>>, %arg6: memref<1x24x16xbf16, #tpu.memory_space<vmem>>, %arg7: memref<1x1x24xf32, #tpu.memory_space<vmem>>) attributes {dimension_semantics = [#tpu.dimension_semantics<parallel>], iteration_bounds = array<i64: 2>, scalar_prefetch = 0 : i64, scratch_operands = 0 : i64, tpu.core_type = #tpu.core_type<tc>, window_params = [{transform_indices = @transform_0, window_bounds = array<i64: 1, 38, 32>}, {pipeline_mode = #tpu.pipeline_mode<synchronous>, transform_indices = @transform_1, window_bounds = array<i64: 288, 16>}, {pipeline_mode = #tpu.pipeline_mode<synchronous>, transform_indices = @transform_2, window_bounds = array<i64: 1, 16>}, {pipeline_mode = #tpu.pipeline_mode<synchronous>, transform_indices = @transform_3, window_bounds = array<i64: 1, 32>}, {pipeline_mode = #tpu.pipeline_mode<synchronous>, transform_indices = @transform_4, window_bounds = array<i64: 1, 1>}, {transform_indices = @transform_5, window_bounds = array<i64: 1, 24, 16>}, {transform_indices = @transform_6, window_bounds = array<i64: 1, 1, 24>}]} {
    %c0 = arith.constant 0 : index
    %c0_0 = arith.constant 0 : index
    %c0_1 = arith.constant 0 : index
    %0 = vector.load %arg1[%c0, %c0_0, %c0_1] : memref<1x38x32xf32, #tpu.memory_space<vmem>>, vector<1x38x32xf32>
    %1 = vector.shape_cast %0 : vector<1x38x32xf32> to vector<38x32xf32>
    %2 = vector.extract_strided_slice %1 {offsets = [0, 0], sizes = [24, 32], strides = [1, 1]} : vector<38x32xf32> to vector<24x32xf32>
    %3 = vector.extract_strided_slice %1 {offsets = [1, 0], sizes = [24, 32], strides = [1, 1]} : vector<38x32xf32> to vector<24x32xf32>
    %4 = vector.extract_strided_slice %1 {offsets = [2, 0], sizes = [24, 32], strides = [1, 1]} : vector<38x32xf32> to vector<24x32xf32>
    %5 = vector.extract_strided_slice %1 {offsets = [6, 0], sizes = [24, 32], strides = [1, 1]} : vector<38x32xf32> to vector<24x32xf32>
    %6 = vector.extract_strided_slice %1 {offsets = [7, 0], sizes = [24, 32], strides = [1, 1]} : vector<38x32xf32> to vector<24x32xf32>
    %7 = vector.extract_strided_slice %1 {offsets = [8, 0], sizes = [24, 32], strides = [1, 1]} : vector<38x32xf32> to vector<24x32xf32>
    %8 = vector.extract_strided_slice %1 {offsets = [12, 0], sizes = [24, 32], strides = [1, 1]} : vector<38x32xf32> to vector<24x32xf32>
    %9 = vector.extract_strided_slice %1 {offsets = [13, 0], sizes = [24, 32], strides = [1, 1]} : vector<38x32xf32> to vector<24x32xf32>
    %10 = vector.extract_strided_slice %1 {offsets = [14, 0], sizes = [24, 32], strides = [1, 1]} : vector<38x32xf32> to vector<24x32xf32>
    %11 = arith.truncf %2 : vector<24x32xf32> to vector<24x32xbf16>
    %12 = arith.truncf %3 : vector<24x32xf32> to vector<24x32xbf16>
    %13 = arith.truncf %4 : vector<24x32xf32> to vector<24x32xbf16>
    %14 = arith.truncf %5 : vector<24x32xf32> to vector<24x32xbf16>
    %15 = arith.truncf %6 : vector<24x32xf32> to vector<24x32xbf16>
    %16 = arith.truncf %7 : vector<24x32xf32> to vector<24x32xbf16>
    %17 = arith.truncf %8 : vector<24x32xf32> to vector<24x32xbf16>
    %18 = arith.truncf %9 : vector<24x32xf32> to vector<24x32xbf16>
    %19 = arith.truncf %10 : vector<24x32xf32> to vector<24x32xbf16>
    %20 = tpu.concatenate %11, %12, %13, %14, %15, %16, %17, %18, %19 in 1 : vector<24x32xbf16>, vector<24x32xbf16>, vector<24x32xbf16>, vector<24x32xbf16>, vector<24x32xbf16>, vector<24x32xbf16>, vector<24x32xbf16>, vector<24x32xbf16>, vector<24x32xbf16> -> vector<24x288xbf16>
    %c0_2 = arith.constant 0 : index
    %c0_3 = arith.constant 0 : index
    %21 = vector.load %arg2[%c0_2, %c0_3] : memref<288x16xbf16, #tpu.memory_space<vmem>>, vector<288x16xbf16>
    %cst = arith.constant dense<0.000000e+00> : vector<24x16xf32>
    %22 = tpu.matmul %20, %21, %cst {dimension_numbers = #tpu.dot_dimension_numbers<[1], [0], [0], [1], [0, 0, 1, 1], [], []>} : vector<24x288xbf16>, vector<288x16xbf16>, vector<24x16xf32> -> vector<24x16xf32>
    %c0_4 = arith.constant 0 : index
    %c0_5 = arith.constant 0 : index
    %23 = vector.load %arg3[%c0_4, %c0_5] : memref<1x16xf32, #tpu.memory_space<vmem>>, vector<1x16xf32>
    %24 = vector.broadcast %23 : vector<1x16xf32> to vector<24x16xf32>
    %25 = arith.addf %22, %24 : vector<24x16xf32>
    %26 = arith.mulf %25, %25 : vector<24x16xf32>
    %cst_6 = arith.constant dense<0.000000e+00> : vector<24xf32>
    %27 = vector.multi_reduction <add>, %26, %cst_6 [1] : vector<24x16xf32> to vector<24xf32>
    %28 = vector.shape_cast %27 : vector<24xf32> to vector<24x1xf32>
    %cst_7 = arith.constant 1.000000e-24 : f32
    %29 = vector.broadcast %cst_7 : f32 to vector<24x1xf32>
    %30 = arith.maximumf %28, %29 : vector<24x1xf32>
    %31 = math.rsqrt %30 : vector<24x1xf32>
    %32 = vector.broadcast %31 : vector<24x1xf32> to vector<24x16xf32>
    %33 = arith.mulf %25, %32 : vector<24x16xf32>
    %34 = arith.truncf %33 : vector<24x16xf32> to vector<24x16xbf16>
    %c0_8 = arith.constant 0 : index
    %c0_9 = arith.constant 0 : index
    %c0_10 = arith.constant 0 : index
    %35 = vector.load %arg6[%c0_8, %c0_9, %c0_10] : memref<1x24x16xbf16, #tpu.memory_space<vmem>>, vector<1x24x16xbf16>
    %36 = vector.shape_cast %35 : vector<1x24x16xbf16> to vector<24x16xbf16>
    %37 = vector.shape_cast %34 : vector<24x16xbf16> to vector<1x24x16xbf16>
    tpu.vector_store %arg6[%c0_8, %c0_9, %c0_10], %37 {strides = array<i32>} : memref<1x24x16xbf16, #tpu.memory_space<vmem>>, vector<1x24x16xbf16>,
    %38 = arith.mulf %6, %6 : vector<24x32xf32>
    %cst_11 = arith.constant dense<0.000000e+00> : vector<24xf32>
    %39 = vector.multi_reduction <add>, %38, %cst_11 [1] : vector<24x32xf32> to vector<24xf32>
    %40 = vector.shape_cast %39 : vector<24xf32> to vector<24x1xf32>
    %cst_12 = arith.constant 1.000000e-24 : f32
    %41 = vector.broadcast %cst_12 : f32 to vector<24x1xf32>
    %42 = arith.maximumf %40, %41 : vector<24x1xf32>
    %43 = math.rsqrt %42 : vector<24x1xf32>
    %44 = vector.broadcast %43 : vector<24x1xf32> to vector<24x32xf32>
    %45 = arith.mulf %6, %44 : vector<24x32xf32>
    %c0_13 = arith.constant 0 : index
    %c0_14 = arith.constant 0 : index
    %46 = vector.load %arg4[%c0_13, %c0_14] : memref<1x32xf32, #tpu.memory_space<vmem>>, vector<1x32xf32>
    %cst_15 = arith.constant dense<0.000000e+00> : vector<1x24xf32>
    %47 = tpu.matmul %46, %45, %cst_15 {dimension_numbers = #tpu.dot_dimension_numbers<[1], [1], [0], [0], [0, 0, 1, 0], [], []>} : vector<1x32xf32>, vector<24x32xf32>, vector<1x24xf32> -> vector<1x24xf32>
    %c0_16 = arith.constant 0 : index
    %c0_17 = arith.constant 0 : index
    %48 = vector.load %arg5[%c0_16, %c0_17] : memref<1x1xf32, #tpu.memory_space<vmem>>, vector<1x1xf32>
    %49 = vector.broadcast %48 : vector<1x1xf32> to vector<1x24xf32>
    %50 = arith.addf %47, %49 : vector<1x24xf32>
    %c0_18 = arith.constant 0 : index
    %c0_19 = arith.constant 0 : index
    %c0_20 = arith.constant 0 : index
    %51 = vector.load %arg7[%c0_18, %c0_19, %c0_20] : memref<1x1x24xf32, #tpu.memory_space<vmem>>, vector<1x1x24xf32>
    %52 = vector.shape_cast %51 : vector<1x1x24xf32> to vector<1x24xf32>
    %53 = vector.shape_cast %50 : vector<1x24xf32> to vector<1x1x24xf32>
    tpu.vector_store %arg7[%c0_18, %c0_19, %c0_20], %53 {strides = array<i32>} : memref<1x1x24xf32, #tpu.memory_space<vmem>>, vector<1x1x24xf32>,
    return
  }
  func.func @transform_0(%arg0: i32) -> (i32, i32, i32) {
    %c0_i32 = arith.constant 0 : i32
    %c0_i32_0 = arith.constant 0 : i32
    %c0_i32_1 = arith.constant 0 : i32
    return %arg0, %c0_i32, %c0_i32_0 : i32, i32, i32
  }
  func.func @transform_1(%arg0: i32) -> (i32, i32) {
    %c0_i32 = arith.constant 0 : i32
    %c0_i32_0 = arith.constant 0 : i32
    %c0_i32_1 = arith.constant 0 : i32
    return %c0_i32, %c0_i32_0 : i32, i32
  }
  func.func @transform_2(%arg0: i32) -> (i32, i32) {
    %c0_i32 = arith.constant 0 : i32
    %c0_i32_0 = arith.constant 0 : i32
    %c0_i32_1 = arith.constant 0 : i32
    return %c0_i32, %c0_i32_0 : i32, i32
  }
  func.func @transform_3(%arg0: i32) -> (i32, i32) {
    %c0_i32 = arith.constant 0 : i32
    %c0_i32_0 = arith.constant 0 : i32
    %c0_i32_1 = arith.constant 0 : i32
    return %c0_i32, %c0_i32_0 : i32, i32
  }
  func.func @transform_4(%arg0: i32) -> (i32, i32) {
    %c0_i32 = arith.constant 0 : i32
    %c0_i32_0 = arith.constant 0 : i32
    %c0_i32_1 = arith.constant 0 : i32
    return %c0_i32, %c0_i32_0 : i32, i32
  }
  func.func @transform_5(%arg0: i32) -> (i32, i32, i32) {
    %c0_i32 = arith.constant 0 : i32
    %c0_i32_0 = arith.constant 0 : i32
    %c0_i32_1 = arith.constant 0 : i32
    return %arg0, %c0_i32, %c0_i32_0 : i32, i32, i32
  }
  func.func @transform_6(%arg0: i32) -> (i32, i32, i32) {
    %c0_i32 = arith.constant 0 : i32
    %c0_i32_0 = arith.constant 0 : i32
    %c0_i32_1 = arith.constant 0 : i32
    return %arg0, %c0_i32, %c0_i32_0 : i32, i32, i32
  }
}

module attributes {stable_mosaic.version = 11 : i64} {
  func.func @_corr_pool_cls_kernel(%arg0: i32, %arg1: i32, %arg2: memref<1x16x16xbf16, #tpu.memory_space<vmem>>, %arg3: memref<1x16x16xbf16, #tpu.memory_space<vmem>>, %arg4: memref<1x16x24xbf16, #tpu.memory_space<vmem>>, %arg5: memref<8x24xf32, #tpu.memory_space<vmem>>, %arg6: memref<8x1xf32, #tpu.memory_space<vmem>>, %arg7: memref<1x16x16xf32, #tpu.memory_space<vmem>>, %arg8: memref<1x8x16xf32, #tpu.memory_space<vmem>>) attributes {dimension_semantics = [#tpu.dimension_semantics<parallel>, #tpu.dimension_semantics<parallel>], iteration_bounds = array<i64: 2, 1>, scalar_prefetch = 0 : i64, scratch_operands = 0 : i64, tpu.core_type = #tpu.core_type<tc>, window_params = [{transform_indices = @transform_0, window_bounds = array<i64: 1, 16, 16>}, {transform_indices = @transform_1, window_bounds = array<i64: 1, 16, 16>}, {transform_indices = @transform_2, window_bounds = array<i64: 1, 16, 24>}, {pipeline_mode = #tpu.pipeline_mode<synchronous>, transform_indices = @transform_3, window_bounds = array<i64: 8, 24>}, {pipeline_mode = #tpu.pipeline_mode<synchronous>, transform_indices = @transform_4, window_bounds = array<i64: 8, 1>}, {transform_indices = @transform_5, window_bounds = array<i64: 1, 16, 16>}, {transform_indices = @transform_6, window_bounds = array<i64: 1, 8, 16>}]} {
    %c0 = arith.constant 0 : index
    %c0_0 = arith.constant 0 : index
    %c0_1 = arith.constant 0 : index
    %0 = vector.load %arg2[%c0, %c0_0, %c0_1] : memref<1x16x16xbf16, #tpu.memory_space<vmem>>, vector<1x16x16xbf16>
    %1 = vector.shape_cast %0 : vector<1x16x16xbf16> to vector<16x16xbf16>
    %c0_2 = arith.constant 0 : index
    %c0_3 = arith.constant 0 : index
    %c0_4 = arith.constant 0 : index
    %2 = vector.load %arg3[%c0_2, %c0_3, %c0_4] : memref<1x16x16xbf16, #tpu.memory_space<vmem>>, vector<1x16x16xbf16>
    %3 = vector.shape_cast %2 : vector<1x16x16xbf16> to vector<16x16xbf16>
    %cst = arith.constant dense<0.000000e+00> : vector<16x16xf32>
    %4 = tpu.matmul %1, %3, %cst {dimension_numbers = #tpu.dot_dimension_numbers<[1], [1], [0], [0], [0, 0, 1, 0], [], []>} : vector<16x16xbf16>, vector<16x16xbf16>, vector<16x16xf32> -> vector<16x16xf32>
    %c0_5 = arith.constant 0 : index
    %c0_6 = arith.constant 0 : index
    %c0_7 = arith.constant 0 : index
    %5 = vector.load %arg7[%c0_5, %c0_6, %c0_7] : memref<1x16x16xf32, #tpu.memory_space<vmem>>, vector<1x16x16xf32>
    %6 = vector.shape_cast %5 : vector<1x16x16xf32> to vector<16x16xf32>
    %7 = vector.shape_cast %4 : vector<16x16xf32> to vector<1x16x16xf32>
    tpu.vector_store %arg7[%c0_5, %c0_6, %c0_7], %7 {strides = array<i32>} : memref<1x16x16xf32, #tpu.memory_space<vmem>>, vector<1x16x16xf32>,
    %cst_8 = arith.constant 0.000000e+00 : f32
    %8 = vector.broadcast %cst_8 : f32 to vector<16x16xf32>
    %9 = arith.cmpf olt, %4, %8 : vector<16x16xf32>
    %cst_9 = arith.constant 0.000000e+00 : f32
    %10 = vector.broadcast %cst_9 : f32 to vector<16x16xf32>
    %11 = arith.select %9, %10, %4 : vector<16x16xi1>, vector<16x16xf32>
    %12 = arith.truncf %11 : vector<16x16xf32> to vector<16x16xbf16>
    %c0_10 = arith.constant 0 : index
    %c0_11 = arith.constant 0 : index
    %c0_12 = arith.constant 0 : index
    %13 = vector.load %arg4[%c0_10, %c0_11, %c0_12] : memref<1x16x24xbf16, #tpu.memory_space<vmem>>, vector<1x16x24xbf16>
    %14 = vector.shape_cast %13 : vector<1x16x24xbf16> to vector<16x24xbf16>
    %cst_13 = arith.constant dense<0.000000e+00> : vector<16x24xf32>
    %15 = tpu.matmul %12, %14, %cst_13 {dimension_numbers = #tpu.dot_dimension_numbers<[1], [0], [0], [1], [0, 0, 1, 1], [], []>} : vector<16x16xbf16>, vector<16x24xbf16>, vector<16x24xf32> -> vector<16x24xf32>
    %cst_14 = arith.constant dense<0.000000e+00> : vector<16xf32>
    %16 = vector.multi_reduction <add>, %11, %cst_14 [1] : vector<16x16xf32> to vector<16xf32>
    %17 = vector.shape_cast %16 : vector<16xf32> to vector<16x1xf32>
    %cst_15 = arith.constant 9.99999997E-7 : f32
    %18 = vector.broadcast %cst_15 : f32 to vector<16x1xf32>
    %19 = arith.addf %17, %18 : vector<16x1xf32>
    %20 = tpu.reciprocal %19 {approx = true} : vector<16x1xf32> -> vector<16x1xf32>
    %21 = vector.broadcast %20 : vector<16x1xf32> to vector<16x24xf32>
    %22 = arith.mulf %15, %21 : vector<16x24xf32>
    %c0_16 = arith.constant 0 : index
    %c0_17 = arith.constant 0 : index
    %23 = vector.load %arg5[%c0_16, %c0_17] : memref<8x24xf32, #tpu.memory_space<vmem>>, vector<8x24xf32>
    %cst_18 = arith.constant dense<0.000000e+00> : vector<8x16xf32>
    %24 = tpu.matmul %23, %22, %cst_18 {dimension_numbers = #tpu.dot_dimension_numbers<[1], [1], [0], [0], [0, 0, 1, 0], [], []>} : vector<8x24xf32>, vector<16x24xf32>, vector<8x16xf32> -> vector<8x16xf32>
    %c0_19 = arith.constant 0 : index
    %c0_20 = arith.constant 0 : index
    %25 = vector.load %arg6[%c0_19, %c0_20] : memref<8x1xf32, #tpu.memory_space<vmem>>, vector<8x1xf32>
    %26 = vector.broadcast %25 : vector<8x1xf32> to vector<8x16xf32>
    %27 = arith.addf %24, %26 : vector<8x16xf32>
    %c0_21 = arith.constant 0 : index
    %c0_22 = arith.constant 0 : index
    %c0_23 = arith.constant 0 : index
    %28 = vector.load %arg8[%c0_21, %c0_22, %c0_23] : memref<1x8x16xf32, #tpu.memory_space<vmem>>, vector<1x8x16xf32>
    %29 = vector.shape_cast %28 : vector<1x8x16xf32> to vector<8x16xf32>
    %30 = vector.shape_cast %27 : vector<8x16xf32> to vector<1x8x16xf32>
    tpu.vector_store %arg8[%c0_21, %c0_22, %c0_23], %30 {strides = array<i32>} : memref<1x8x16xf32, #tpu.memory_space<vmem>>, vector<1x8x16xf32>,
    return
  }
  func.func @transform_0(%arg0: i32, %arg1: i32) -> (i32, i32, i32) {
    %c0_i32 = arith.constant 0 : i32
    %c0_i32_0 = arith.constant 0 : i32
    return %arg0, %arg1, %c0_i32 : i32, i32, i32
  }
  func.func @transform_1(%arg0: i32, %arg1: i32) -> (i32, i32, i32) {
    %c0_i32 = arith.constant 0 : i32
    %c0_i32_0 = arith.constant 0 : i32
    %c0_i32_1 = arith.constant 0 : i32
    return %arg0, %c0_i32, %c0_i32_0 : i32, i32, i32
  }
  func.func @transform_2(%arg0: i32, %arg1: i32) -> (i32, i32, i32) {
    %c0_i32 = arith.constant 0 : i32
    %c0_i32_0 = arith.constant 0 : i32
    %c0_i32_1 = arith.constant 0 : i32
    return %arg0, %c0_i32, %c0_i32_0 : i32, i32, i32
  }
  func.func @transform_3(%arg0: i32, %arg1: i32) -> (i32, i32) {
    %c0_i32 = arith.constant 0 : i32
    %c0_i32_0 = arith.constant 0 : i32
    %c0_i32_1 = arith.constant 0 : i32
    return %c0_i32, %c0_i32_0 : i32, i32
  }
  func.func @transform_4(%arg0: i32, %arg1: i32) -> (i32, i32) {
    %c0_i32 = arith.constant 0 : i32
    %c0_i32_0 = arith.constant 0 : i32
    %c0_i32_1 = arith.constant 0 : i32
    return %c0_i32, %c0_i32_0 : i32, i32
  }
  func.func @transform_5(%arg0: i32, %arg1: i32) -> (i32, i32, i32) {
    %c0_i32 = arith.constant 0 : i32
    %c0_i32_0 = arith.constant 0 : i32
    return %arg0, %arg1, %c0_i32 : i32, i32, i32
  }
  func.func @transform_6(%arg0: i32, %arg1: i32) -> (i32, i32, i32) {
    %c0_i32 = arith.constant 0 : i32
    %c0_i32_0 = arith.constant 0 : i32
    return %arg0, %c0_i32, %arg1 : i32, i32, i32
  }
}

</mosaic_0001>

<llo_original>
// kernel: clip_dinoiser_forward.3
$region0: #{clip_dinoiser_forward.3}
  #allocation0 [shape = 'u32[]', space=smem, size = 0x4, offset = 0x4, fixed_abs, tag = 'smem constant byte address 0x4 - core index']
  #allocation1 [shape = 'u32[144,128]{1,0:T(1,128)}', space=vmem, size = 0x12000, scoped, tag = 'internal scratch']
  %s0 = inlined_call_operand.vmem [shape: bf16[2,16,16], index: 0, kind: input, shape index: {}, may-alias: {0,1}]
  %s1 = inlined_call_operand.vmem [shape: bf16[2,16,16], index: 1, kind: input, shape index: {}, may-alias: {0,1}]
  %s2 = inlined_call_operand.vmem [shape: bf16[2,16,24], index: 2, kind: input, shape index: {}]
  %s3 = inlined_call_operand.vmem [shape: f32[8,24], index: 3, kind: input, shape index: {}]
  %s4 = inlined_call_operand.vmem [shape: f32[8,1], index: 4, kind: input, shape index: {}]
  %s5 = inlined_call_operand.hbm [shape: f32[2,16,16], index: 5, kind: output, shape index: {0}]
  %s6 = inlined_call_operand.vmem [shape: f32[2,8,16], index: 6, kind: output, shape index: {1}]
  %7 = xla_tuple %s5, %s6
  %s8 = sld [smem:[#allocation0]]
  $region61: #{clip_dinoiser_forward.3} parent=0
    _
  %s10 = ssub.s32 1, %s8
  %s11 = scalar_select 0, %s10, %s8
  $region1: #{clip_dinoiser_forward.3} parent=0
    #allocation2 [shape = 'u8[16384]{0}', space=vmem, size = 0x4000, scoped, tag = 'output window, operand 0']
    #allocation3 [shape = 's32[2]{0}', space=sflag, size = 0x8, scoped, tag = 'scoped memory for clip_dinoiser_forward.3']
    %12 = vsyncpa [#allocation3], 0
    %s13 = scalar_lea.sflag [#allocation3], 1
    %14 = vsyncpa %s13, 0
    loop: start=0, step=1, limit=4
    $region2: #{clip_dinoiser_forward.3} parent=1 // loop_pre_header
      _
    $region3: #{clip_dinoiser_forward.3} parent=1 // loop_header
      %s16 = sphi 0, %s20
      %p17 = scmp.ge.s32.totalorder %s16, 4
      %s23 = sphi 0, %s35
      %s24 = sphi 0, %s31
      %s25 = sphi 0, %s23
      %s26 = sphi 0, %s24
      %s27 = sphi 0, %s25
      %s28 = sphi 0, %s26
      %s40 = sphi 0, %s42
      %s43 = sphi 0, %s40
      %s44 = sphi 0, %s43
      %s60 = sphi 0, %s44
      %s66 = sphi 0, %s68
      %s69 = sphi 0, %s66
      %s70 = sphi 0, %s69
      %s86 = sphi 0, %s70
      %s92 = sphi 0, %s94
      %s95 = sphi 0, %s92
      %s96 = sphi 0, %s95
      %s112 = sphi 0, %s96
      %s116 = sphi 0, %s116
      %s118 = sphi 0, %s116
      %s119 = sphi 0, %s118
      %s133 = sphi 0, %s119
      %s137 = sphi 0, %s137
      %s139 = sphi 0, %s137
      %s140 = sphi 0, %s139
      %s154 = sphi 0, %s140
      %s162 = sphi 0, %s164
      %s165 = sphi 0, %s162
      %s166 = sphi 0, %s165
      %s182 = sphi 0, %s166
      %s190 = sphi 0, %s192
      %s193 = sphi 0, %s190
      %s194 = sphi 0, %s193
      %s210 = sphi 0, %s194
    $region4: #{clip_dinoiser_forward.3} parent=1 // loop_header_branch
      %19 = sbr.rel (%p17) target = $region8
    $region5: #{clip_dinoiser_forward.3} parent=1 // loop_body
      %s21 = ssub.s32 %s16, 1
      %s22 = ssub.s32 %s16, 2
      %s29 = sadd.s32 1, %s24
      %p30 = scmp.ge.s32.totalorder %s29, 1
      %s31 = scalar_select %p30, 0, %s29
      %s32 = sadd.s32 1, %s23
      %s33 = scalar_select %p30, %s32, %s23
      %p34 = scmp.ge.s32.totalorder %s33, 2
      %s35 = scalar_select %p34, 0, %s33
      %s36 = ssub.s32 %s23, %s35
      %s37 = ssub.s32 %s24, %s31
      %s38 = sor.u32 %s36, %s37
      %p39 = scmp.eq.s32.totalorder %s38, 0
      %s41 = sadd.s32 %s40, 1
      %s42 = scalar_select %p39, %s40, %s41
      %p45 = pneg %p39
      %p46 = scmp.eq.s32.totalorder %s16, 1
      %p47 = por %p45, %p46
      %p48 = scmp.ne.s32.totalorder %s40, %s43
      %p49 = scmp.eq.s32.totalorder %s16, 0
      %p50 = por %p48, %p49
      %p51 = scmp.ne.s32.totalorder %s40, %s43
      %p52 = scmp.eq.s32.totalorder %s21, 1
      %p53 = por %p51, %p52
      %p54 = scmp.ne.s32.totalorder %s43, %s44
      %p55 = scmp.eq.s32.totalorder %s21, 0
      %p56 = por %p54, %p55
      %p57 = scmp.ne.s32.totalorder %s43, %s44
      %p58 = scmp.eq.s32.totalorder %s22, 1
      %p59 = por %p57, %p58
      %p61 = scmp.ne.s32.totalorder %s44, %s60
      %p62 = scmp.eq.s32.totalorder %s22, 0
      %p63 = por %p61, %p62
      %s64 = ssub.s32 %s23, %s35
      %p65 = scmp.eq.s32.totalorder %s64, 0
      %s67 = sadd.s32 %s66, 1
      %s68 = scalar_select %p65, %s66, %s67
      %p71 = pneg %p65
      %p72 = scmp.eq.s32.totalorder %s16, 1
      %p73 = por %p71, %p72
      %p74 = scmp.ne.s32.totalorder %s66, %s69
      %p75 = scmp.eq.s32.totalorder %s16, 0
      %p76 = por %p74, %p75
      %p77 = scmp.ne.s32.totalorder %s66, %s69
      %p78 = scmp.eq.s32.totalorder %s21, 1
      %p79 = por %p77, %p78
      %p80 = scmp.ne.s32.totalorder %s69, %s70
      %p81 = scmp.eq.s32.totalorder %s21, 0
      %p82 = por %p80, %p81
      %p83 = scmp.ne.s32.totalorder %s69, %s70
      %p84 = scmp.eq.s32.totalorder %s22, 1
      %p85 = por %p83, %p84
      %p87 = scmp.ne.s32.totalorder %s70, %s86
      %p88 = scmp.eq.s32.totalorder %s22, 0
      %p89 = por %p87, %p88
      %s90 = ssub.s32 %s23, %s35
      %p91 = scmp.eq.s32.totalorder %s90, 0
      %s93 = sadd.s32 %s92, 1
      %s94 = scalar_select %p91, %s92, %s93
      %p97 = pneg %p91
      %p98 = scmp.eq.s32.totalorder %s16, 1
      %p99 = por %p97, %p98
      %p100 = scmp.ne.s32.totalorder %s92, %s95
      %p101 = scmp.eq.s32.totalorder %s16, 0
      %p102 = por %p100, %p101
      %p103 = scmp.ne.s32.totalorder %s92, %s95
      %p104 = scmp.eq.s32.totalorder %s21, 1
      %p105 = por %p103, %p104
      %p106 = scmp.ne.s32.totalorder %s95, %s96
      %p107 = scmp.eq.s32.totalorder %s21, 0
      %p108 = por %p106, %p107
      %p109 = scmp.ne.s32.totalorder %s95, %s96
      %p110 = scmp.eq.s32.totalorder %s22, 1
      %p111 = por %p109, %p110
      %p113 = scmp.ne.s32.totalorder %s96, %s112
      %p114 = scmp.eq.s32.totalorder %s22, 0
      %p115 = por %p113, %p114
      %s117 = sadd.s32 %s116, 1
      %p120 = scmp.eq.s32.totalorder %s16, 1
      %p121 = scmp.ne.s32.totalorder %s116, %s118
      %p122 = scmp.eq.s32.totalorder %s16, 0
      %p123 = por %p121, %p122
      %p124 = scmp.ne.s32.totalorder %s116, %s118
      %p125 = scmp.eq.s32.totalorder %s21, 1
      %p126 = por %p124, %p125
      %p127 = scmp.ne.s32.totalorder %s118, %s119
      %p128 = scmp.eq.s32.totalorder %s21, 0
      %p129 = por %p127, %p128
      %p130 = scmp.ne.s32.totalorder %s118, %s119
      %p131 = scmp.eq.s32.totalorder %s22, 1
      %p132 = por %p130, %p131
      %p134 = scmp.ne.s32.totalorder %s119, %s133
      %p135 = scmp.eq.s32.totalorder %s22, 0
      %p136 = por %p134, %p135
      %s138 = sadd.s32 %s137, 1
      %p141 = scmp.eq.s32.totalorder %s16, 1
      %p142 = scmp.ne.s32.totalorder %s137, %s139
      %p143 = scmp.eq.s32.totalorder %s16, 0
      %p144 = por %p142, %p143
      %p145 = scmp.ne.s32.totalorder %s137, %s139
      %p146 = scmp.eq.s32.totalorder %s21, 1
      %p147 = por %p145, %p146
      %p148 = scmp.ne.s32.totalorder %s139, %s140
      %p149 = scmp.eq.s32.totalorder %s21, 0
      %p150 = por %p148, %p149
      %p151 = scmp.ne.s32.totalorder %s139, %s140
      %p152 = scmp.eq.s32.totalorder %s22, 1
      %p153 = por %p151, %p152
      %p155 = scmp.ne.s32.totalorder %s140, %s154
      %p156 = scmp.eq.s32.totalorder %s22, 0
      %p157 = por %p155, %p156
      %s158 = ssub.s32 %s23, %s35
      %s159 = ssub.s32 %s24, %s31
      %s160 = sor.u32 %s158, %s159
      %p161 = scmp.eq.s32.totalorder %s160, 0
      %s163 = sadd.s32 %s162, 1
      %s164 = scalar_select %p161, %s162, %s163
      %p167 = pneg %p161
      %p168 = scmp.eq.s32.totalorder %s16, 1
      %p169 = por %p167, %p168
      %p170 = scmp.ne.s32.totalorder %s162, %s165
      %p171 = scmp.eq.s32.totalorder %s16, 0
      %p172 = por %p170, %p171
      %p173 = scmp.ne.s32.totalorder %s162, %s165
      %p174 = scmp.eq.s32.totalorder %s21, 1
      %p175 = por %p173, %p174
      %p176 = scmp.ne.s32.totalorder %s165, %s166
      %p177 = scmp.eq.s32.totalorder %s21, 0
      %p178 = por %p176, %p177
      %p179 = scmp.ne.s32.totalorder %s165, %s166
      %p180 = scmp.eq.s32.totalorder %s22, 1
      %p181 = por %p179, %p180
      %p183 = scmp.ne.s32.totalorder %s166, %s182
      %p184 = scmp.eq.s32.totalorder %s22, 0
      %p185 = por %p183, %p184
      %s186 = ssub.s32 %s23, %s35
      %s187 = ssub.s32 %s24, %s31
      %s188 = sor.u32 %s186, %s187
      %p189 = scmp.eq.s32.totalorder %s188, 0
      %s191 = sadd.s32 %s190, 1
      %s192 = scalar_select %p189, %s190, %s191
      %p195 = pneg %p189
      %p196 = scmp.eq.s32.totalorder %s16, 1
      %p197 = por %p195, %p196
      %p198 = scmp.ne.s32.totalorder %s190, %s193
      %p199 = scmp.eq.s32.totalorder %s16, 0
      %p200 = por %p198, %p199
      %p201 = scmp.ne.s32.totalorder %s190, %s193
      %p202 = scmp.eq.s32.totalorder %s21, 1
      %p203 = por %p201, %p202
      %p204 = scmp.ne.s32.totalorder %s193, %s194
      %p205 = scmp.eq.s32.totalorder %s21, 0
      %p206 = por %p204, %p205
      %p207 = scmp.ne.s32.totalorder %s193, %s194
      %p208 = scmp.eq.s32.totalorder %s22, 1
      %p209 = por %p207, %p208
      %p211 = scmp.ne.s32.totalorder %s194, %s210
      %p212 = scmp.eq.s32.totalorder %s22, 0
      %p213 = por %p211, %p212
      %p214 = scmp.le.s32.totalorder 1, %s16
      %p215 = scmp.lt.s32.totalorder %s16, 3
      %p216 = pnand %p214, %p215
      %p217 = pneg %p216
      // Predicated region
      $region9: #{clip_dinoiser_forward.3} parent=5 // pred_check
        _
      $region10: #{clip_dinoiser_forward.3} parent=5 // pred_check_branch
        %219 = sbr.rel (%p216) target = $region12
      $region11: #{clip_dinoiser_forward.3} parent=5 // pred_region
        %s220 = ssub.s32 %s16, 1
        // Predicated region
        $region13: #{clip_dinoiser_forward.3} parent=11 // pred_check
          %p221 = pneg %p129
        $region14: #{clip_dinoiser_forward.3} parent=11 // pred_check_branch
          %223 = sbr.rel (%p221) target = $region16
        $region15: #{clip_dinoiser_forward.3} parent=11 // pred_region
          _
        $region16: #{clip_dinoiser_forward.3} parent=11 // pred_fallthru
          _
        // Predicated region
        $region17: #{clip_dinoiser_forward.3} parent=11 // pred_check
          %p224 = pneg %p150
        $region18: #{clip_dinoiser_forward.3} parent=11 // pred_check_branch
          %226 = sbr.rel (%p224) target = $region20
        $region19: #{clip_dinoiser_forward.3} parent=11 // pred_region
          _
        $region20: #{clip_dinoiser_forward.3} parent=11 // pred_fallthru
          _
      $region12: #{clip_dinoiser_forward.3} parent=5 // pred_fallthru
        _
      %p227 = scmp.lt.s32.totalorder %s16, 2
      // Predicated region
      $region21: #{clip_dinoiser_forward.3} parent=5 // pred_check
        %p228 = pneg %p227
      $region22: #{clip_dinoiser_forward.3} parent=5 // pred_check_branch
        %230 = sbr.rel (%p228) target = $region24
      $region23: #{clip_dinoiser_forward.3} parent=5 // pred_region
        // Predicated region
        $region25: #{clip_dinoiser_forward.3} parent=23 // pred_check
          %p231 = pneg %p50
        $region26: #{clip_dinoiser_forward.3} parent=23 // pred_check_branch
          %233 = sbr.rel (%p231) target = $region28
        $region27: #{clip_dinoiser_forward.3} parent=23 // pred_region
          %s234 = smul.u32 2, %s24
          %p235 = scmp.lt.s32.totalorder %s23, 1
          %s236 = scalar_select %p235, %s23, 1
          %p237 = scmp.lt.s32.totalorder %s234, 1
          %s238 = scalar_select %p237, %s234, 1
          %s239 = smul.addr %s236, 2
          %s240 = sadd.s32 %s238, %s239
          %s241 = smul.addr %s240, 4
          %s242 = scalar_lea.vmem %s0, %s241
          %s243 = smul.u32 2, %s24
        $region28: #{clip_dinoiser_forward.3} parent=23 // pred_fallthru
          _
        // Predicated region
        $region29: #{clip_dinoiser_forward.3} parent=23 // pred_check
          %p244 = pneg %p76
        $region30: #{clip_dinoiser_forward.3} parent=23 // pred_check_branch
          %246 = sbr.rel (%p244) target = $region32
        $region31: #{clip_dinoiser_forward.3} parent=23 // pred_region
          %p247 = scmp.lt.s32.totalorder %s23, 1
          %s248 = scalar_select %p247, %s23, 1
          %s249 = smul.addr %s248, 2
          %s250 = smul.addr %s249, 4
          %s251 = scalar_lea.vmem %s1, %s250
        $region32: #{clip_dinoiser_forward.3} parent=23 // pred_fallthru
          _
        // Predicated region
        $region33: #{clip_dinoiser_forward.3} parent=23 // pred_check
          %p252 = pneg %p102
        $region34: #{clip_dinoiser_forward.3} parent=23 // pred_check_branch
          %254 = sbr.rel (%p252) target = $region36
        $region35: #{clip_dinoiser_forward.3} parent=23 // pred_region
          %p255 = scmp.lt.s32.totalorder %s23, 1
          %s256 = scalar_select %p255, %s23, 1
          %s257 = smul.addr %s256, 2
          %s258 = smul.addr %s257, 4
          %s259 = scalar_lea.vmem %s2, %s258
        $region36: #{clip_dinoiser_forward.3} parent=23 // pred_fallthru
          _
      $region24: #{clip_dinoiser_forward.3} parent=5 // pred_fallthru
        _
      %p260 = scmp.le.s32.totalorder 1, %s16
      %p261 = scmp.lt.s32.totalorder %s16, 3
      %p262 = pnand %p260, %p261
      %p263 = pneg %p262
      // Predicated region
      $region37: #{clip_dinoiser_forward.3} parent=5 // pred_check
        _
      $region38: #{clip_dinoiser_forward.3} parent=5 // pred_check_branch
        %265 = sbr.rel (%p262) target = $region40
      $region39: #{clip_dinoiser_forward.3} parent=5 // pred_region
        %s266 = ssub.s32 %s16, 1
        %s267 = smul.u32 2, %s26
        %p268 = scmp.lt.s32.totalorder %s25, 1
        %s269 = scalar_select %p268, %s25, 1
        %p270 = scmp.lt.s32.totalorder %s267, 1
        %s271 = scalar_select %p270, %s267, 1
        %s272 = smul.addr %s269, 2
        %s273 = sadd.s32 %s271, %s272
        %s274 = smul.addr %s273, 4
        %s275 = scalar_lea.vmem %s0, %s274
        %p276 = pneg %p56
        %p277 = pneg %p53
        %p278 = scmp.lt.s32.totalorder %s25, 1
        %s279 = scalar_select %p278, %s25, 1
        %s280 = smul.addr %s279, 2
        %s281 = smul.addr %s280, 4
        %s282 = scalar_lea.vmem %s1, %s281
        %p283 = pneg %p82
        %p284 = pneg %p79
        %p285 = scmp.lt.s32.totalorder %s25, 1
        %s286 = scalar_select %p285, %s25, 1
        %s287 = smul.addr %s286, 2
        %s288 = smul.addr %s287, 4
        %s289 = scalar_lea.vmem %s2, %s288
        %p290 = pneg %p108
        %p291 = pneg %p105
        %p292 = pneg %p129
        %p293 = pneg %p126
        %p294 = pneg %p150
        %p295 = pneg %p147
        %p296 = pneg %p178
        %p297 = pneg %p175
        %s298 = sand.u32 %s165, 1
        %s299 = scalar_lea.sflag [#allocation3], %s298
        %s300 = sand.u32 %s165, 1
        %s301 = smul.addr %s300, 16
        %s302 = scalar_lea.vmem [#allocation2], %s301
        %p303 = pneg %p206
        %p304 = pneg %p203
        %p305 = scmp.lt.s32.totalorder %s25, 1
        %s306 = scalar_select %p305, %s25, 1
        %p307 = scmp.lt.s32.totalorder %s26, 0
        %s308 = scalar_select %p307, %s26, 0
        %s309 = sadd.s32 %s308, %s306
        %s310 = smul.addr %s309, 8
        %s311 = scalar_lea.vmem %s6, %s310
        %s312 = smul.u32 2, %s26
        %p313 = scmp.lt.s32.totalorder %s25, 1
        %s314 = scalar_select %p313, %s25, 1
        %p315 = scmp.lt.s32.totalorder %s312, 1
        %s316 = scalar_select %p315, %s312, 1
        %s317 = smul.addr %s314, 2
        %s318 = sadd.s32 %s316, %s317
        %s319 = smul.addr %s318, 4
        %s320 = scalar_lea.vmem %s0, %s319
        %s321 = smul.u32 2, %s26
        %p322 = scmp.lt.s32.totalorder %s25, 1
        %s323 = scalar_select %p322, %s25, 1
        %s324 = smul.addr %s323, 2
        %s325 = smul.addr %s324, 4
        %s326 = scalar_lea.vmem %s1, %s325
        %p327 = scmp.lt.s32.totalorder %s25, 1
        %s328 = scalar_select %p327, %s25, 1
        %s329 = smul.addr %s328, 2
        %s330 = smul.addr %s329, 4
        %s331 = scalar_lea.vmem %s2, %s330
        %s332 = smul.u32 2, %s26
        %p333 = scmp.lt.s32.totalorder %s25, 1
        %s334 = scalar_select %p333, %s25, 1
        %p335 = scmp.lt.s32.totalorder %s26, 0
        %s336 = scalar_select %p335, %s26, 0
        %s337 = sadd.s32 %s336, %s334
        %s338 = smul.addr %s337, 8
        %s339 = scalar_lea.vmem %s6, %s338
        %v341 = vld [vmem:[%s320] sm:$0xf]
        %v342 = vld [vmem:[%s320 + $0x4] sm:$0xf]
        %v343 = vld [vmem:[%s326] sm:$0xf]
        %v344 = vld [vmem:[%s326 + $0x4] sm:$0xf]
        %v347 = vunpack.c.l.b16 %v341
        %v348 = vunpack.c.l.b16 %v342
        %v349 = vpack.c.b16 %v348, %v347
        %v352 = vunpack.c.l.b16 %v343
        %v353 = vunpack.c.l.b16 %v344
        %v354 = vpack.c.b16 %v353, %v352
        %vm355 = vcmask 130048
        %v357 = vsel %vm355, %v349, 0
        %v360 = vsel %vm355, %v354, 0
        %362 = vmatprep.subr.bf16.mxu0 0
        %363 = vmatpush1.bf16.xpose.msra.mxu0 0
        %364 = vmatprep.subr.bf16.mxu0 0
        %365 = vmatpush1.bf16.xpose.msra.mxu0 0
        %366 = vmatprep.subr.bf16.mxu0 0
        %367 = vmatpush1.bf16.xpose.msra.mxu0 0
        %368 = vmatprep.subr.bf16.mxu0 0
        %369 = vmatpush1.bf16.xpose.msra.mxu0 0
        %370 = vmatprep.subr.bf16.mxu0 0
        %371 = vmatpush1.bf16.xpose.msra.mxu0 0
        %372 = vmatprep.subr.bf16.mxu0 0
        %373 = vmatpush1.bf16.xpose.msra.mxu0 0
        %374 = vmatprep.subr.bf16.mxu0 0
        %375 = vmatpush1.bf16.xpose.msra.mxu0 0
        %376 = vmatprep.subr.bf16.mxu0 0
        %377 = vmatpush1.bf16.xpose.msra.mxu0 %v360
        %378 = vmatprep.subr.bf16.mxu0 0
        %379 = vmatpush2.bf16.xpose.msra.mxu0 0
        %380 = vmatprep.subr.bf16.mxu0 0
        %381 = vmatpush2.bf16.xpose.msra.mxu0 0
        %382 = vmatprep.subr.bf16.mxu0 0
        %383 = vmatpush2.bf16.xpose.msra.mxu0 0
        %384 = vmatprep.subr.bf16.mxu0 0
        %385 = vmatpush2.bf16.xpose.msra.mxu0 0
        %386 = vmatprep.subr.bf16.mxu0 0
        %387 = vmatpush2.bf16.xpose.msra.mxu0 0
        %388 = vmatprep.subr.bf16.mxu0 0
        %389 = vmatpush2.bf16.xpose.msra.mxu0 0
        %390 = vmatprep.subr.bf16.mxu0 0
        %391 = vmatpush2.bf16.xpose.msra.mxu0 0
        %392 = vmatprep.subr.bf16.mxu0 0
        %393 = vmatpush2.bf16.xpose.msra.mxu0 0
        %394 = vmatprep.mubr.bf16.mxu0 0
        %395 = vmatmul.mubr.bf16.gmra.mxu0 %v357
        %v396 = vpop.f32.mrf.mxu0
        %v397 = vadd.f32 0.0, %v396
        %v398 = vpop.f32.mrf.mxu0
        %v399 = vpop.f32.mrf.mxu0
        %v400 = vadd.f32 0.0, %v399
        %v401 = vpop.f32.mrf.mxu0
        %402 = vdwg.mxu0
        %403 = vst.msk [vmem:[%s302] sm:$0xff] %vm355, %v397
        %404 = vst.msk [vmem:[%s302 + $0x8] sm:$0xff] %vm355, %v400
        %vm405 = vcmp.lt.f32.partialorder %v397, 0.0
        %vm406 = vcmp.lt.f32.partialorder %v400, 0.0
        %v407 = vsel %vm405, 0.0, %v397
        %v408 = vsel %vm406, 0.0, %v400
        %v409 = vpack.c.bf16 %v408, %v407
        %v410 = vld [vmem:[%s331] sm:$0xf]
        %v411 = vld [vmem:[%s331 + $0x4] sm:$0xf]
        %v414 = vunpack.c.l.b16 %v410
        %v415 = vunpack.c.l.b16 %v411
        %v416 = vpack.c.b16 %v415, %v414
        %v419 = vsel %vm355, %v409, 0
        %421 = vmatprep.subr.bf16.mxu0 0
        %422 = vmatpush1.bf16.msra.mxu0 0
        %423 = vmatprep.subr.bf16.mxu0 0
        %424 = vmatpush1.bf16.msra.mxu0 0
        %425 = vmatprep.subr.bf16.mxu0 0
        %426 = vmatpush1.bf16.msra.mxu0 0
        %427 = vmatprep.subr.bf16.mxu0 0
        %428 = vmatpush1.bf16.msra.mxu0 0
        %429 = vmatprep.subr.bf16.mxu0 0
        %430 = vmatpush1.bf16.msra.mxu0 0
        %431 = vmatprep.subr.bf16.mxu0 0
        %432 = vmatpush1.bf16.msra.mxu0 0
        %433 = vmatprep.subr.bf16.mxu0 0
        %434 = vmatpush1.bf16.msra.mxu0 0
        %435 = vmatprep.subr.bf16.mxu0 0
        %436 = vmatpush1.bf16.msra.mxu0 %v416
        %437 = vmatprep.subr.bf16.mxu0 0
        %438 = vmatpush2.bf16.msra.mxu0 0
        %439 = vmatprep.subr.bf16.mxu0 0
        %440 = vmatpush2.bf16.msra.mxu0 0
        %441 = vmatprep.subr.bf16.mxu0 0
        %442 = vmatpush2.bf16.msra.mxu0 0
        %443 = vmatprep.subr.bf16.mxu0 0
        %444 = vmatpush2.bf16.msra.mxu0 0
        %445 = vmatprep.subr.bf16.mxu0 0
        %446 = vmatpush2.bf16.msra.mxu0 0
        %447 = vmatprep.subr.bf16.mxu0 0
        %448 = vmatpush2.bf16.msra.mxu0 0
        %449 = vmatprep.subr.bf16.mxu0 0
        %450 = vmatpush2.bf16.msra.mxu0 0
        %451 = vmatprep.subr.bf16.mxu0 0
        %452 = vmatpush2.bf16.msra.mxu0 0
        %453 = vmatprep.mubr.bf16.mxu0 0
        %454 = vmatmul.mubr.bf16.gmra.mxu0 %v419
        %v455 = vpop.f32.mrf.mxu0
        %v456 = vadd.f32 0.0, %v455
        %v457 = vpop.f32.mrf.mxu0
        %v458 = vpop.f32.mrf.mxu0
        %v459 = vadd.f32 0.0, %v458
        %v460 = vpop.f32.mrf.mxu0
        %461 = vdwg.mxu0
        %v462 = vsel %vm355, %v407, 0.0
        %463 = vadd.xlane.f32.xlu0 %v462
        %v464 = vpop.xlane.xlu0 %463
        %v465 = vsel %vm355, %v408, 0.0
        %466 = vadd.xlane.f32.xlu0 %v465
        %v467 = vpop.xlane.xlu0 %466
        %v468 = vadd.f32 %v464, 1e-06
        %v469 = vadd.f32 %v467, 1e-06
        %v470 = vrcp.pop %v468
        %v471 = vrcp.pop %v469
        %v472 = vmul.f32 %v456, %v470
        %v473 = vmul.f32 %v459, %v471
        %v474 = vld [vmem:[%s3] sm:$0xff]
        %v475 = vld [vmem:[%s4] sm:$0xff]
        %477 = vset.pattern.permute.xlu0 0
        %478 = vperm.xlu0 %477, %v475
        %v479 = vpop.permute.xlu0 %478
        %vm481 = vcmask 195584
        %v483 = vsel %vm481, %v474, 0
        %v486 = vsel %vm481, %v472, 0
        %v489 = vsel %vm481, %v473, 0
        %491 = vmatprep.subr.mxu0 0.0
        %492 = vmatpush1.xpose.msra.mxu0 0.0
        %493 = vmatprep.subr.mxu0 0.0
        %494 = vmatpush1.xpose.msra.mxu0 0.0
        %495 = vmatprep.subr.mxu0 0.0
        %496 = vmatpush1.xpose.msra.mxu0 0.0
        %497 = vmatprep.subr.mxu0 0.0
        %498 = vmatpush1.xpose.msra.mxu0 0.0
        %499 = vmatprep.subr.mxu0 0.0
        %500 = vmatpush1.xpose.msra.mxu0 0.0
        %501 = vmatprep.subr.mxu0 0.0
        %502 = vmatpush1.xpose.msra.mxu0 0.0
        %503 = vmatprep.subr.mxu0 0.0
        %504 = vmatpush1.xpose.msra.mxu0 0.0
        %505 = vmatprep.subr.mxu0 0.0
        %506 = vmatpush1.xpose.msra.mxu0 0.0
        %507 = vmatprep.subr.mxu0 0.0
        %508 = vmatpush1.xpose.msra.mxu0 0.0
        %509 = vmatprep.subr.mxu0 0.0
        %510 = vmatpush1.xpose.msra.mxu0 0.0
        %511 = vmatprep.subr.mxu0 0.0
        %512 = vmatpush1.xpose.msra.mxu0 0.0
        %513 = vmatprep.subr.mxu0 0.0
        %514 = vmatpush1.xpose.msra.mxu0 0.0
        %515 = vmatprep.subr.mxu0 0.0
        %516 = vmatpush1.xpose.msra.mxu0 0.0
        %517 = vmatprep.subr.mxu0 0.0
        %518 = vmatpush1.xpose.msra.mxu0 0.0
        %519 = vmatprep.subr.mxu0 0.0
        %520 = vmatpush1.xpose.msra.mxu0 %v489
        %521 = vmatprep.subr.mxu0 0.0
        %522 = vmatpush1.xpose.msra.mxu0 %v486
        %523 = vmatprep.subr.mxu0 0.0
        %524 = vmatpush2.xpose.msra.mxu0 0.0
        %525 = vmatprep.subr.mxu0 0.0
        %526 = vmatpush2.xpose.msra.mxu0 0.0
        %527 = vmatprep.subr.mxu0 0.0
        %528 = vmatpush2.xpose.msra.mxu0 0.0
        %529 = vmatprep.subr.mxu0 0.0
        %530 = vmatpush2.xpose.msra.mxu0 0.0
        %531 = vmatprep.subr.mxu0 0.0
        %532 = vmatpush2.xpose.msra.mxu0 0.0
        %533 = vmatprep.subr.mxu0 0.0
        %534 = vmatpush2.xpose.msra.mxu0 0.0
        %535 = vmatprep.subr.mxu0 0.0
        %536 = vmatpush2.xpose.msra.mxu0 0.0
        %537 = vmatprep.subr.mxu0 0.0
        %538 = vmatpush2.xpose.msra.mxu0 0.0
        %539 = vmatprep.subr.mxu0 0.0
        %540 = vmatpush2.xpose.msra.mxu0 0.0
        %541 = vmatprep.subr.mxu0 0.0
        %542 = vmatpush2.xpose.msra.mxu0 0.0
        %543 = vmatprep.subr.mxu0 0.0
        %544 = vmatpush2.xpose.msra.mxu0 0.0
        %545 = vmatprep.subr.mxu0 0.0
        %546 = vmatpush2.xpose.msra.mxu0 0.0
        %547 = vmatprep.subr.mxu0 0.0
        %548 = vmatpush2.xpose.msra.mxu0 0.0
        %549 = vmatprep.subr.mxu0 0.0
        %550 = vmatpush2.xpose.msra.mxu0 0.0
        %551 = vmatprep.subr.mxu0 0.0
        %552 = vmatpush2.xpose.msra.mxu0 0.0
        %553 = vmatprep.subr.mxu0 0.0
        %554 = vmatpush2.xpose.msra.mxu0 0.0
        %555 = vmatprep.mubr.f32.mxu0 0.0
        %556 = vmatmul.mubr.f32.gmra.mxu0 %v483
        %v557 = vpop.f32.mrf.mxu0
        %v558 = vadd.f32 %v479, %v557
        %v559 = vpop.f32.mrf.mxu0
        %560 = vdwg.mxu0
        %561 = vst.msk [vmem:[%s339] sm:$0xff] %vm355, %v558
        %s562 = sand.u32 %s165, 1
        %s563 = scalar_lea.sflag [#allocation3], %s562
        %s564 = sand.u32 %s165, 1
        %s565 = smul.addr %s564, 16
        %s566 = scalar_lea.vmem [#allocation2], %s565
        %p567 = scmp.lt.s32.totalorder %s25, 1
        %s568 = scalar_select %p567, %s25, 1
        %p569 = scmp.lt.s32.totalorder %s26, 0
        %s570 = scalar_select %p569, %s26, 0
        %s571 = sadd.s32 %s570, %s568
        %s572 = smul.addr %s571, 8
        %s573 = scalar_lea.vmem %s6, %s572
        // Predicated region
        $region41: #{clip_dinoiser_forward.3} parent=39 // pred_check
          %p574 = pneg %p175
        $region42: #{clip_dinoiser_forward.3} parent=39 // pred_check_branch
          %576 = sbr.rel (%p574) target = $region44
        $region43: #{clip_dinoiser_forward.3} parent=39 // pred_region
          %s577 = smul.u32 2, %s26
          %s579 = ssub.s32 256, 256
          %580 = vsyncadd %s563, %s579
          %s581 = smul.addr %s25, 2
          %s582 = sadd.s32 %s577, %s581
          %s583 = smul.addr %s582, 128
          %s584 = scalar_lea.hbm %s5, %s583
          %s585 = sshll.u32 %s566, 4
          %s586 = int_to_ptr.vmem [resolvable:$true] %s585
          %591 = dma.vmem_to_hbm [thread:$0]  %s586, 256, %s584, %s563, 128, 128, 8
        $region44: #{clip_dinoiser_forward.3} parent=39 // pred_fallthru
          _
        // Predicated region
        $region45: #{clip_dinoiser_forward.3} parent=39 // pred_check
          %p592 = pneg %p203
        $region46: #{clip_dinoiser_forward.3} parent=39 // pred_check_branch
          %594 = sbr.rel (%p592) target = $region48
        $region47: #{clip_dinoiser_forward.3} parent=39 // pred_region
          _
        $region48: #{clip_dinoiser_forward.3} parent=39 // pred_fallthru
          _
      $region40: #{clip_dinoiser_forward.3} parent=5 // pred_fallthru
        _
      %p595 = scmp.le.s32.totalorder 2, %s16
      // Predicated region
      $region49: #{clip_dinoiser_forward.3} parent=5 // pred_check
        %p596 = pneg %p595
      $region50: #{clip_dinoiser_forward.3} parent=5 // pred_check_branch
        %598 = sbr.rel (%p596) target = $region52
      $region51: #{clip_dinoiser_forward.3} parent=5 // pred_region
        %s599 = ssub.s32 %s16, 2
        // Predicated region
        $region53: #{clip_dinoiser_forward.3} parent=51 // pred_check
          %p600 = pneg %p181
        $region54: #{clip_dinoiser_forward.3} parent=51 // pred_check_branch
          %602 = sbr.rel (%p600) target = $region56
        $region55: #{clip_dinoiser_forward.3} parent=51 // pred_region
          %s603 = sand.u32 %s166, 1
          %s604 = scalar_lea.sflag [#allocation3], %s603
          %s605 = sand.u32 %s166, 1
          %s606 = smul.addr %s605, 16
          %s607 = scalar_lea.vmem [#allocation2], %s606
          %608 = dma.done %s604, 256
        $region56: #{clip_dinoiser_forward.3} parent=51 // pred_fallthru
          _
        // Predicated region
        $region57: #{clip_dinoiser_forward.3} parent=51 // pred_check
          %p609 = pneg %p209
        $region58: #{clip_dinoiser_forward.3} parent=51 // pred_check_branch
          %611 = sbr.rel (%p609) target = $region60
        $region59: #{clip_dinoiser_forward.3} parent=51 // pred_region
          %p612 = scmp.lt.s32.totalorder %s27, 1
          %s613 = scalar_select %p612, %s27, 1
          %p614 = scmp.lt.s32.totalorder %s28, 0
          %s615 = scalar_select %p614, %s28, 0
          %s616 = sadd.s32 %s615, %s613
          %s617 = smul.addr %s616, 8
          %s618 = scalar_lea.vmem %s6, %s617
        $region60: #{clip_dinoiser_forward.3} parent=51 // pred_fallthru
          _
      $region52: #{clip_dinoiser_forward.3} parent=5 // pred_fallthru
        _
    $region6: #{clip_dinoiser_forward.3} parent=1 // loop_footer
      %s20 = sadd.s32 1, %s16
    $region7: #{clip_dinoiser_forward.3} parent=1 // loop_footer_branch
      %15 = sbr.rel target = $region3
    $region8: #{clip_dinoiser_forward.3} parent=1 // loop_exit
      _
    %619 = vsyncpa [#allocation3], 1
    %s620 = scalar_lea.sflag [#allocation3], 1
    %621 = vsyncpa %s620, 1

// kernel: clip_dinoiser_forward.2
$region0: #{clip_dinoiser_forward.2}
  #allocation0 [shape = 'u32[]', space=smem, size = 0x4, offset = 0x4, fixed_abs, tag = 'smem constant byte address 0x4 - core index']
  #allocation1 [shape = 'u32[144,128]{1,0:T(1,128)}', space=vmem, size = 0x12000, scoped, tag = 'internal scratch']
  #allocation2 [shape = 'f32[1,1]{1,0:T(1,128)S(1)}', space=vmem, size = 0x200, scoped, tag = 'scoped memory for clip_dinoiser_forward.2']
  %s0 = inlined_call_operand.vmem [shape: f32[2,38,32], index: 0, kind: input, shape index: {}]
  %s1 = inlined_call_operand.vmem [shape: bf16[288,16], index: 1, kind: input, shape index: {}]
  %s2 = inlined_call_operand.vmem [shape: f32[1,16], index: 2, kind: input, shape index: {}]
  %s3 = inlined_call_operand.vmem [shape: f32[1,32], index: 3, kind: input, shape index: {}]
  %s4 = inlined_call_operand.<no memory space> [shape: f32[1,1], index: 4, kind: input, shape index: {}]
  %s5 = inlined_call_operand.vmem [shape: bf16[2,24,16], index: 5, kind: output, shape index: {0}]
  %s6 = inlined_call_operand.vmem [shape: f32[2,1,24], index: 6, kind: output, shape index: {1}]
  %7 = xla_tuple %s5, %s6
  %s8 = sld [smem:[#allocation0]]
  $region61: #{clip_dinoiser_forward.2} parent=0
    _
  %s10 = ssub.s32 1, %s8
  %s11 = scalar_select 0, %s10, %s8
  %v12 = vstv %s4
  %13 = vst [vmem:[#allocation2] sm:$0x1] %v12
  loop: start=0, step=1, limit=4
  $region2: #{clip_dinoiser_forward.2} parent=0 // loop_pre_header
    _
  $region3: #{clip_dinoiser_forward.2} parent=0 // loop_header
    %s15 = sphi 0, %s19
    %p16 = scmp.ge.s32.totalorder %s15, 4
    %s25 = sphi 0, %s27
    %s28 = sphi 0, %s25
    %s29 = sphi 0, %s28
    %s45 = sphi 0, %s29
    %s49 = sphi 0, %s49
    %s51 = sphi 0, %s49
    %s52 = sphi 0, %s51
    %s66 = sphi 0, %s52
    %s70 = sphi 0, %s70
    %s72 = sphi 0, %s70
    %s73 = sphi 0, %s72
    %s87 = sphi 0, %s73
    %s91 = sphi 0, %s91
    %s93 = sphi 0, %s91
    %s94 = sphi 0, %s93
    %s108 = sphi 0, %s94
    %s112 = sphi 0, %s112
    %s114 = sphi 0, %s112
    %s115 = sphi 0, %s114
    %s129 = sphi 0, %s115
    %s135 = sphi 0, %s137
    %s138 = sphi 0, %s135
    %s139 = sphi 0, %s138
    %s155 = sphi 0, %s139
    %s161 = sphi 0, %s163
    %s164 = sphi 0, %s161
    %s165 = sphi 0, %s164
    %s181 = sphi 0, %s165
  $region4: #{clip_dinoiser_forward.2} parent=0 // loop_header_branch
    %18 = sbr.rel (%p16) target = $region8
  $region5: #{clip_dinoiser_forward.2} parent=0 // loop_body
    %s20 = ssub.s32 %s15, 1
    %s21 = ssub.s32 %s15, 2
    %s22 = sadd.s32 %s15, 1
    %s23 = ssub.s32 %s15, %s22
    %p24 = scmp.eq.s32.totalorder %s23, 0
    %s26 = sadd.s32 %s25, 1
    %s27 = scalar_select %p24, %s25, %s26
    %p30 = pneg %p24
    %p31 = scmp.eq.s32.totalorder %s15, 1
    %p32 = por %p30, %p31
    %p33 = scmp.ne.s32.totalorder %s25, %s28
    %p34 = scmp.eq.s32.totalorder %s15, 0
    %p35 = por %p33, %p34
    %p36 = scmp.ne.s32.totalorder %s25, %s28
    %p37 = scmp.eq.s32.totalorder %s20, 1
    %p38 = por %p36, %p37
    %p39 = scmp.ne.s32.totalorder %s28, %s29
    %p40 = scmp.eq.s32.totalorder %s20, 0
    %p41 = por %p39, %p40
    %p42 = scmp.ne.s32.totalorder %s28, %s29
    %p43 = scmp.eq.s32.totalorder %s21, 1
    %p44 = por %p42, %p43
    %p46 = scmp.ne.s32.totalorder %s29, %s45
    %p47 = scmp.eq.s32.totalorder %s21, 0
    %p48 = por %p46, %p47
    %s50 = sadd.s32 %s49, 1
    %p53 = scmp.eq.s32.totalorder %s15, 1
    %p54 = scmp.ne.s32.totalorder %s49, %s51
    %p55 = scmp.eq.s32.totalorder %s15, 0
    %p56 = por %p54, %p55
    %p57 = scmp.ne.s32.totalorder %s49, %s51
    %p58 = scmp.eq.s32.totalorder %s20, 1
    %p59 = por %p57, %p58
    %p60 = scmp.ne.s32.totalorder %s51, %s52
    %p61 = scmp.eq.s32.totalorder %s20, 0
    %p62 = por %p60, %p61
    %p63 = scmp.ne.s32.totalorder %s51, %s52
    %p64 = scmp.eq.s32.totalorder %s21, 1
    %p65 = por %p63, %p64
    %p67 = scmp.ne.s32.totalorder %s52, %s66
    %p68 = scmp.eq.s32.totalorder %s21, 0
    %p69 = por %p67, %p68
    %s71 = sadd.s32 %s70, 1
    %p74 = scmp.eq.s32.totalorder %s15, 1
    %p75 = scmp.ne.s32.totalorder %s70, %s72
    %p76 = scmp.eq.s32.totalorder %s15, 0
    %p77 = por %p75, %p76
    %p78 = scmp.ne.s32.totalorder %s70, %s72
    %p79 = scmp.eq.s32.totalorder %s20, 1
    %p80 = por %p78, %p79
    %p81 = scmp.ne.s32.totalorder %s72, %s73
    %p82 = scmp.eq.s32.totalorder %s20, 0
    %p83 = por %p81, %p82
    %p84 = scmp.ne.s32.totalorder %s72, %s73
    %p85 = scmp.eq.s32.totalorder %s21, 1
    %p86 = por %p84, %p85
    %p88 = scmp.ne.s32.totalorder %s73, %s87
    %p89 = scmp.eq.s32.totalorder %s21, 0
    %p90 = por %p88, %p89
    %s92 = sadd.s32 %s91, 1
    %p95 = scmp.eq.s32.totalorder %s15, 1
    %p96 = scmp.ne.s32.totalorder %s91, %s93
    %p97 = scmp.eq.s32.totalorder %s15, 0
    %p98 = por %p96, %p97
    %p99 = scmp.ne.s32.totalorder %s91, %s93
    %p100 = scmp.eq.s32.totalorder %s20, 1
    %p101 = por %p99, %p100
    %p102 = scmp.ne.s32.totalorder %s93, %s94
    %p103 = scmp.eq.s32.totalorder %s20, 0
    %p104 = por %p102, %p103
    %p105 = scmp.ne.s32.totalorder %s93, %s94
    %p106 = scmp.eq.s32.totalorder %s21, 1
    %p107 = por %p105, %p106
    %p109 = scmp.ne.s32.totalorder %s94, %s108
    %p110 = scmp.eq.s32.totalorder %s21, 0
    %p111 = por %p109, %p110
    %s113 = sadd.s32 %s112, 1
    %p116 = scmp.eq.s32.totalorder %s15, 1
    %p117 = scmp.ne.s32.totalorder %s112, %s114
    %p118 = scmp.eq.s32.totalorder %s15, 0
    %p119 = por %p117, %p118
    %p120 = scmp.ne.s32.totalorder %s112, %s114
    %p121 = scmp.eq.s32.totalorder %s20, 1
    %p122 = por %p120, %p121
    %p123 = scmp.ne.s32.totalorder %s114, %s115
    %p124 = scmp.eq.s32.totalorder %s20, 0
    %p125 = por %p123, %p124
    %p126 = scmp.ne.s32.totalorder %s114, %s115
    %p127 = scmp.eq.s32.totalorder %s21, 1
    %p128 = por %p126, %p127
    %p130 = scmp.ne.s32.totalorder %s115, %s129
    %p131 = scmp.eq.s32.totalorder %s21, 0
    %p132 = por %p130, %p131
    %s133 = ssub.s32 %s15, %s22
    %p134 = scmp.eq.s32.totalorder %s133, 0
    %s136 = sadd.s32 %s135, 1
    %s137 = scalar_select %p134, %s135, %s136
    %p140 = pneg %p134
    %p141 = scmp.eq.s32.totalorder %s15, 1
    %p142 = por %p140, %p141
    %p143 = scmp.ne.s32.totalorder %s135, %s138
    %p144 = scmp.eq.s32.totalorder %s15, 0
    %p145 = por %p143, %p144
    %p146 = scmp.ne.s32.totalorder %s135, %s138
    %p147 = scmp.eq.s32.totalorder %s20, 1
    %p148 = por %p146, %p147
    %p149 = scmp.ne.s32.totalorder %s138, %s139
    %p150 = scmp.eq.s32.totalorder %s20, 0
    %p151 = por %p149, %p150
    %p152 = scmp.ne.s32.totalorder %s138, %s139
    %p153 = scmp.eq.s32.totalorder %s21, 1
    %p154 = por %p152, %p153
    %p156 = scmp.ne.s32.totalorder %s139, %s155
    %p157 = scmp.eq.s32.totalorder %s21, 0
    %p158 = por %p156, %p157
    %s159 = ssub.s32 %s15, %s22
    %p160 = scmp.eq.s32.totalorder %s159, 0
    %s162 = sadd.s32 %s161, 1
    %s163 = scalar_select %p160, %s161, %s162
    %p166 = pneg %p160
    %p167 = scmp.eq.s32.totalorder %s15, 1
    %p168 = por %p166, %p167
    %p169 = scmp.ne.s32.totalorder %s161, %s164
    %p170 = scmp.eq.s32.totalorder %s15, 0
    %p171 = por %p169, %p170
    %p172 = scmp.ne.s32.totalorder %s161, %s164
    %p173 = scmp.eq.s32.totalorder %s20, 1
    %p174 = por %p172, %p173
    %p175 = scmp.ne.s32.totalorder %s164, %s165
    %p176 = scmp.eq.s32.totalorder %s20, 0
    %p177 = por %p175, %p176
    %p178 = scmp.ne.s32.totalorder %s164, %s165
    %p179 = scmp.eq.s32.totalorder %s21, 1
    %p180 = por %p178, %p179
    %p182 = scmp.ne.s32.totalorder %s165, %s181
    %p183 = scmp.eq.s32.totalorder %s21, 0
    %p184 = por %p182, %p183
    %p185 = scmp.le.s32.totalorder 1, %s15
    %p186 = scmp.lt.s32.totalorder %s15, 3
    %p187 = pnand %p185, %p186
    %p188 = pneg %p187
    // Predicated region
    $region9: #{clip_dinoiser_forward.2} parent=5 // pred_check
      _
    $region10: #{clip_dinoiser_forward.2} parent=5 // pred_check_branch
      %190 = sbr.rel (%p187) target = $region12
    $region11: #{clip_dinoiser_forward.2} parent=5 // pred_region
      %s191 = ssub.s32 %s15, 1
      // Predicated region
      $region13: #{clip_dinoiser_forward.2} parent=11 // pred_check
        %p192 = pneg %p62
      $region14: #{clip_dinoiser_forward.2} parent=11 // pred_check_branch
        %194 = sbr.rel (%p192) target = $region16
      $region15: #{clip_dinoiser_forward.2} parent=11 // pred_region
        _
      $region16: #{clip_dinoiser_forward.2} parent=11 // pred_fallthru
        _
      // Predicated region
      $region17: #{clip_dinoiser_forward.2} parent=11 // pred_check
        %p195 = pneg %p83
      $region18: #{clip_dinoiser_forward.2} parent=11 // pred_check_branch
        %197 = sbr.rel (%p195) target = $region20
      $region19: #{clip_dinoiser_forward.2} parent=11 // pred_region
        _
      $region20: #{clip_dinoiser_forward.2} parent=11 // pred_fallthru
        _
      // Predicated region
      $region21: #{clip_dinoiser_forward.2} parent=11 // pred_check
        %p198 = pneg %p104
      $region22: #{clip_dinoiser_forward.2} parent=11 // pred_check_branch
        %200 = sbr.rel (%p198) target = $region24
      $region23: #{clip_dinoiser_forward.2} parent=11 // pred_region
        _
      $region24: #{clip_dinoiser_forward.2} parent=11 // pred_fallthru
        _
      // Predicated region
      $region25: #{clip_dinoiser_forward.2} parent=11 // pred_check
        %p201 = pneg %p125
      $region26: #{clip_dinoiser_forward.2} parent=11 // pred_check_branch
        %203 = sbr.rel (%p201) target = $region28
      $region27: #{clip_dinoiser_forward.2} parent=11 // pred_region
        _
      $region28: #{clip_dinoiser_forward.2} parent=11 // pred_fallthru
        _
    $region12: #{clip_dinoiser_forward.2} parent=5 // pred_fallthru
      _
    %p204 = scmp.lt.s32.totalorder %s15, 2
    // Predicated region
    $region29: #{clip_dinoiser_forward.2} parent=5 // pred_check
      %p205 = pneg %p204
    $region30: #{clip_dinoiser_forward.2} parent=5 // pred_check_branch
      %207 = sbr.rel (%p205) target = $region32
    $region31: #{clip_dinoiser_forward.2} parent=5 // pred_region
      // Predicated region
      $region33: #{clip_dinoiser_forward.2} parent=31 // pred_check
        %p208 = pneg %p35
      $region34: #{clip_dinoiser_forward.2} parent=31 // pred_check_branch
        %210 = sbr.rel (%p208) target = $region36
      $region35: #{clip_dinoiser_forward.2} parent=31 // pred_region
        %p211 = scmp.lt.s32.totalorder %s15, 1
        %s212 = scalar_select %p211, %s15, 1
        %s213 = smul.addr %s212, 5
        %s214 = smul.addr %s213, 8
        %s215 = scalar_lea.vmem %s0, %s214
      $region36: #{clip_dinoiser_forward.2} parent=31 // pred_fallthru
        _
    $region32: #{clip_dinoiser_forward.2} parent=5 // pred_fallthru
      _
    %p216 = scmp.le.s32.totalorder 1, %s15
    %p217 = scmp.lt.s32.totalorder %s15, 3
    %p218 = pnand %p216, %p217
    %p219 = pneg %p218
    // Predicated region
    $region37: #{clip_dinoiser_forward.2} parent=5 // pred_check
      _
    $region38: #{clip_dinoiser_forward.2} parent=5 // pred_check_branch
      %221 = sbr.rel (%p218) target = $region40
    $region39: #{clip_dinoiser_forward.2} parent=5 // pred_region
      %s222 = ssub.s32 %s15, 1
      %p223 = scmp.lt.s32.totalorder %s20, 1
      %s224 = scalar_select %p223, %s20, 1
      %s225 = smul.addr %s224, 5
      %s226 = smul.addr %s225, 8
      %s227 = scalar_lea.vmem %s0, %s226
      %p228 = pneg %p41
      %p229 = pneg %p38
      %p230 = pneg %p62
      %p231 = pneg %p59
      %p232 = pneg %p83
      %p233 = pneg %p80
      %p234 = pneg %p104
      %p235 = pneg %p101
      %p236 = pneg %p125
      %p237 = pneg %p122
      %p238 = pneg %p151
      %p239 = pneg %p148
      %p240 = scmp.lt.s32.totalorder %s20, 1
      %s241 = scalar_select %p240, %s20, 1
      %s242 = smul.addr %s241, 3
      %s243 = smul.addr %s242, 4
      %s244 = scalar_lea.vmem %s5, %s243
      %p245 = pneg %p177
      %p246 = pneg %p174
      %p247 = scmp.lt.s32.totalorder %s20, 1
      %s248 = scalar_select %p247, %s20, 1
      %s249 = scalar_lea.vmem %s6, %s248
      %p250 = scmp.lt.s32.totalorder %s20, 1
      %s251 = scalar_select %p250, %s20, 1
      %s252 = smul.addr %s251, 5
      %s253 = smul.addr %s252, 8
      %s254 = scalar_lea.vmem %s0, %s253
      %p255 = scmp.lt.s32.totalorder %s20, 1
      %s256 = scalar_select %p255, %s20, 1
      %s257 = smul.addr %s256, 3
      %s258 = smul.addr %s257, 4
      %s259 = scalar_lea.vmem %s5, %s258
      %p260 = scmp.lt.s32.totalorder %s20, 1
      %s261 = scalar_select %p260, %s20, 1
      %s262 = scalar_lea.vmem %s6, %s261
      %v264 = vld [vmem:[%s254] sm:$0xff]
      %v265 = vld [vmem:[%s254 + $0x8] sm:$0xff]
      %v266 = vld [vmem:[%s254 + $0x10] sm:$0xff]
      %v267 = vld [vmem:[%s254 + $0x18] sm:$0xff]
      %v268 = vld [vmem:[%s254 + $0x20] sm:$0x3f]
      %v269 = vpack.c.bf16 %v265, %v264
      %v270 = vpack.c.bf16 %v266, %v266
      %v271 = vpack.c.bf16 %v267, %v266
      %v272 = vpack.c.bf16 %v266, %v265
      %v273 = vpack.c.bf16 %v267, %v267
      %v274 = vpack.c.bf16 %v268, %v267
      %vm275 = vsmask.f32 7424
      %v277 = vshrl.u32 %v269, 16
      %v279 = vshll.u32 %v269, 16
      %v281 = vrot.slane %v279, 1
      %v282 = vor.u32 %v277, %v281
      %v284 = vshll.u32 %v271, 16
      %v286 = vrot.slane %v284, 1
      %v287 = vsel %vm275, %v282, %v286
      %v288 = vshrl.u32 %v271, 16
      %v290 = vor.u32 %v288, %v286
      %291 = vrot.lane.b32.xlu0 %v287, 32
      %v292 = vpop.permute.xlu0 %291
      %293 = vrot.lane.b32.xlu0 %v290, 32
      %v294 = vpop.permute.xlu0 %293
      %vm297 = vcmask 1046528
      %v298 = vrot.slane %v269, 1
      %v299 = vrot.slane %v271, 1
      %v300 = vsel %vm297, %v298, %v299
      %301 = vrot.lane.b32.xlu0 %v300, 64
      %v302 = vpop.permute.xlu0 %301
      %303 = vrot.lane.b32.xlu0 %v299, 64
      %v304 = vpop.permute.xlu0 %303
      %vm305 = vcmask 1044480
      %v306 = vrot.slane %v269, 3
      %v307 = vrot.slane %v271, 3
      %v308 = vsel %vm305, %v306, %v307
      %309 = vrot.lane.b32.xlu0 %v308, 96
      %v310 = vpop.permute.xlu0 %309
      %311 = vrot.lane.b32.xlu0 %v307, 96
      %v312 = vpop.permute.xlu0 %311
      %vm313 = vsmask.f32 4352
      %v314 = vrot.slane %v277, 3
      %v315 = vrot.slane %v279, 4
      %v316 = vor.u32 %v314, %v315
      %v317 = vrot.slane %v288, 3
      %v318 = vrot.slane %v284, 4
      %v319 = vor.u32 %v317, %v318
      %v320 = vsel %vm313, %v316, %v319
      %323 = vrot.lane.b32.xlu0 %v272, 32
      %v324 = vpop.permute.xlu0 %323
      %325 = vrot.lane.b32.xlu0 %v273, 32
      %v326 = vpop.permute.xlu0 %325
      %vm328 = vcmask 1045504
      %v329 = vrot.slane %v272, 2
      %v330 = vrot.slane %v274, 2
      %v331 = vsel %vm328, %v329, %v330
      %332 = vrot.lane.b32.xlu0 %v331, 64
      %v333 = vpop.permute.xlu0 %332
      %334 = vrot.lane.b32.xlu0 %v330, 64
      %v335 = vpop.permute.xlu0 %334
      %vm336 = vsmask.f32 5376
      %v338 = vshrl.u32 %v272, 16
      %v340 = vrot.slane %v338, 2
      %v341 = vshll.u32 %v272, 16
      %v343 = vrot.slane %v341, 3
      %v344 = vor.u32 %v340, %v343
      %v346 = vshrl.u32 %v274, 16
      %v348 = vrot.slane %v346, 2
      %v349 = vshll.u32 %v274, 16
      %v351 = vrot.slane %v349, 3
      %v352 = vor.u32 %v348, %v351
      %v353 = vsel %vm336, %v344, %v352
      %354 = vrot.lane.b32.xlu0 %v353, 96
      %v355 = vpop.permute.xlu0 %354
      %356 = vrot.lane.b32.xlu0 %v352, 96
      %v357 = vpop.permute.xlu0 %356
      %v358 = vrot.slane %v272, 3
      %v359 = vrot.slane %v274, 3
      %v360 = vsel %vm305, %v358, %v359
      %vm361 = vcmask 261120
      %v363 = vsel %vm361, %v269, %v292
      %v366 = vsel %vm361, %v270, %v294
      %vm367 = vcmask 523264
      %v369 = vsel %vm367, %v363, %v302
      %v371 = vsel %vm367, %v366, %v304
      %vm372 = vcmask 785408
      %v374 = vsel %vm372, %v369, %v310
      %v377 = vsel %vm372, %v371, %v312
      %v381 = vsel %vm361, %v320, %v324
      %v384 = vsel %vm361, %v319, %v326
      %v386 = vsel %vm367, %v381, %v333
      %v388 = vsel %vm367, %v384, %v335
      %v390 = vsel %vm372, %v386, %v355
      %v393 = vsel %vm372, %v388, %v357
      %v395 = vld [vmem:[%s1] sm:$0xf]
      %v396 = vld [vmem:[%s1 + $0x4] sm:$0xf]
      %v397 = vld [vmem:[%s1 + $0x8] sm:$0xf]
      %v398 = vld [vmem:[%s1 + $0xc] sm:$0xf]
      %v399 = vld [vmem:[%s1 + $0x10] sm:$0xf]
      %v400 = vld [vmem:[%s1 + $0x14] sm:$0xf]
      %v401 = vld [vmem:[%s1 + $0x18] sm:$0xf]
      %v402 = vld [vmem:[%s1 + $0x1c] sm:$0xf]
      %v403 = vld [vmem:[%s1 + $0x20] sm:$0xf]
      %v404 = vld [vmem:[%s1 + $0x24] sm:$0xf]
      %v405 = vld [vmem:[%s1 + $0x28] sm:$0xf]
      %v406 = vld [vmem:[%s1 + $0x2c] sm:$0xf]
      %v407 = vld [vmem:[%s1 + $0x30] sm:$0xf]
      %v408 = vld [vmem:[%s1 + $0x34] sm:$0xf]
      %v409 = vld [vmem:[%s1 + $0x38] sm:$0xf]
      %v410 = vld [vmem:[%s1 + $0x3c] sm:$0xf]
      %v411 = vld [vmem:[%s1 + $0x40] sm:$0xf]
      %v412 = vld [vmem:[%s1 + $0x44] sm:$0xf]
      %v413 = vld [vmem:[%s1 + $0x48] sm:$0xf]
      %v414 = vld [vmem:[%s1 + $0x4c] sm:$0xf]
      %v415 = vld [vmem:[%s1 + $0x50] sm:$0xf]
      %v416 = vld [vmem:[%s1 + $0x54] sm:$0xf]
      %v417 = vld [vmem:[%s1 + $0x58] sm:$0xf]
      %v418 = vld [vmem:[%s1 + $0x5c] sm:$0xf]
      %v419 = vld [vmem:[%s1 + $0x60] sm:$0xf]
      %v420 = vld [vmem:[%s1 + $0x64] sm:$0xf]
      %v421 = vld [vmem:[%s1 + $0x68] sm:$0xf]
      %v422 = vld [vmem:[%s1 + $0x6c] sm:$0xf]
      %v423 = vld [vmem:[%s1 + $0x70] sm:$0xf]
      %v424 = vld [vmem:[%s1 + $0x74] sm:$0xf]
      %v425 = vld [vmem:[%s1 + $0x78] sm:$0xf]
      %v426 = vld [vmem:[%s1 + $0x7c] sm:$0xf]
      %v427 = vld [vmem:[%s1 + $0x80] sm:$0xf]
      %v428 = vld [vmem:[%s1 + $0x84] sm:$0xf]
      %v429 = vld [vmem:[%s1 + $0x88] sm:$0xf]
      %v430 = vld [vmem:[%s1 + $0x8c] sm:$0xf]
      %v431 = vld [vmem:[%s2] sm:$0x1]
      %v433 = vlaneseq
      %v434 = vshrl.u32 %v433, 7
      %v435 = vsub.s32 0, %v434
      %v436 = vrot.slane %v431, %v435
      %v474 = vunpack.c.l.b16 %v395
      %v475 = vunpack.c.l.b16 %v396
      %v476 = vunpack.c.l.b16 %v397
      %v477 = vunpack.c.l.b16 %v398
      %v478 = vunpack.c.l.b16 %v399
      %v479 = vunpack.c.l.b16 %v400
      %v480 = vunpack.c.l.b16 %v401
      %v481 = vunpack.c.l.b16 %v402
      %v482 = vunpack.c.l.b16 %v403
      %v483 = vunpack.c.l.b16 %v404
      %v484 = vunpack.c.l.b16 %v405
      %v485 = vunpack.c.l.b16 %v406
      %v486 = vunpack.c.l.b16 %v407
      %v487 = vunpack.c.l.b16 %v408
      %v488 = vunpack.c.l.b16 %v409
      %v489 = vunpack.c.l.b16 %v410
      %v490 = vunpack.c.l.b16 %v411
      %v491 = vunpack.c.l.b16 %v412
      %v492 = vunpack.c.l.b16 %v413
      %v493 = vunpack.c.l.b16 %v414
      %v494 = vunpack.c.l.b16 %v415
      %v495 = vunpack.c.l.b16 %v416
      %v496 = vunpack.c.l.b16 %v417
      %v497 = vunpack.c.l.b16 %v418
      %v498 = vunpack.c.l.b16 %v419
      %v499 = vunpack.c.l.b16 %v420
      %v500 = vunpack.c.l.b16 %v421
      %v501 = vunpack.c.l.b16 %v422
      %v502 = vunpack.c.l.b16 %v423
      %v503 = vunpack.c.l.b16 %v424
      %v504 = vunpack.c.l.b16 %v425
      %v505 = vunpack.c.l.b16 %v426
      %v506 = vunpack.c.l.b16 %v427
      %v507 = vunpack.c.l.b16 %v428
      %v508 = vunpack.c.l.b16 %v429
      %v509 = vunpack.c.l.b16 %v430
      %v510 = vpack.c.b16 %v475, %v474
      %v511 = vpack.c.b16 %v477, %v476
      %v512 = vpack.c.b16 %v479, %v478
      %v513 = vpack.c.b16 %v481, %v480
      %v514 = vpack.c.b16 %v483, %v482
      %v515 = vpack.c.b16 %v485, %v484
      %v516 = vpack.c.b16 %v487, %v486
      %v517 = vpack.c.b16 %v489, %v488
      %v518 = vpack.c.b16 %v491, %v490
      %v519 = vpack.c.b16 %v493, %v492
      %v520 = vpack.c.b16 %v495, %v494
      %v521 = vpack.c.b16 %v497, %v496
      %v522 = vpack.c.b16 %v499, %v498
      %v523 = vpack.c.b16 %v501, %v500
      %v524 = vpack.c.b16 %v503, %v502
      %v525 = vpack.c.b16 %v505, %v504
      %v526 = vpack.c.b16 %v507, %v506
      %v527 = vpack.c.b16 %v509, %v508
      %v547 = vsel %vm361, %v360, 0
      %v550 = vsel %vm361, %v359, 0
      %552 = vmatprep.subr.bf16.mxu0 0
      %553 = vmatpush1.bf16.msra.mxu0 %v517
      %554 = vmatprep.subr.bf16.mxu0 0
      %555 = vmatpush1.bf16.msra.mxu0 %v516
      %556 = vmatprep.subr.bf16.mxu0 0
      %557 = vmatpush1.bf16.msra.mxu0 %v515
      %558 = vmatprep.subr.bf16.mxu0 0
      %559 = vmatpush1.bf16.msra.mxu0 %v514
      %560 = vmatprep.subr.bf16.mxu0 0
      %561 = vmatpush1.bf16.msra.mxu0 %v513
      %562 = vmatprep.subr.bf16.mxu0 0
      %563 = vmatpush1.bf16.msra.mxu0 %v512
      %564 = vmatprep.subr.bf16.mxu0 0
      %565 = vmatpush1.bf16.msra.mxu0 %v511
      %566 = vmatprep.subr.bf16.mxu0 0
      %567 = vmatpush1.bf16.msra.mxu0 %v510
      %568 = vmatprep.subr.bf16.mxu0 0
      %569 = vmatpush2.bf16.msra.mxu0 %v525
      %570 = vmatprep.subr.bf16.mxu0 0
      %571 = vmatpush2.bf16.msra.mxu0 %v524
      %572 = vmatprep.subr.bf16.mxu0 0
      %573 = vmatpush2.bf16.msra.mxu0 %v523
      %574 = vmatprep.subr.bf16.mxu0 0
      %575 = vmatpush2.bf16.msra.mxu0 %v522
      %576 = vmatprep.subr.bf16.mxu0 0
      %577 = vmatpush2.bf16.msra.mxu0 %v521
      %578 = vmatprep.subr.bf16.mxu0 0
      %579 = vmatpush2.bf16.msra.mxu0 %v520
      %580 = vmatprep.subr.bf16.mxu0 0
      %581 = vmatpush2.bf16.msra.mxu0 %v519
      %582 = vmatprep.subr.bf16.mxu0 0
      %583 = vmatpush2.bf16.msra.mxu0 %v518
      %584 = vmatprep.mubr.bf16.mxu0 %v390
      %585 = vmatmul.mubr.bf16.gmra.mxu0 %v374
      %v586 = vpop.f32.mrf.mxu0
      %v587 = vadd.f32 %v436, %v586
      %v588 = vpop.f32.mrf.mxu0
      %v589 = vpop.f32.mrf.mxu0
      %v590 = vadd.f32 %v436, %v589
      %v591 = vpop.f32.mrf.mxu0
      %592 = vmatprep.mubr.bf16.mxu0 %v393
      %593 = vmatmul.mubr.bf16.gmra.mxu0 %v377
      %v594 = vpop.f32.mrf.mxu0
      %v595 = vadd.f32 %v436, %v594
      %v596 = vpop.f32.mrf.mxu0
      %v597 = vpop.f32.mrf.mxu0
      %v598 = vpop.f32.mrf.mxu0
      %599 = vdwg.mxu0
      %600 = vmatprep.subr.bf16.mxu0 0
      %601 = vmatpush1.bf16.msra.mxu0 0
      %602 = vmatprep.subr.bf16.mxu0 0
      %603 = vmatpush1.bf16.msra.mxu0 0
      %604 = vmatprep.subr.bf16.mxu0 0
      %605 = vmatpush1.bf16.msra.mxu0 0
      %606 = vmatprep.subr.bf16.mxu0 0
      %607 = vmatpush1.bf16.msra.mxu0 0
      %608 = vmatprep.subr.bf16.mxu0 0
      %609 = vmatpush1.bf16.msra.mxu0 0
      %610 = vmatprep.subr.bf16.mxu0 0
      %611 = vmatpush1.bf16.msra.mxu0 0
      %612 = vmatprep.subr.bf16.mxu0 0
      %613 = vmatpush1.bf16.msra.mxu0 %v527
      %614 = vmatprep.subr.bf16.mxu0 0
      %615 = vmatpush1.bf16.msra.mxu0 %v526
      %616 = vmatprep.subr.bf16.mxu0 0
      %617 = vmatpush2.bf16.msra.mxu0 0
      %618 = vmatprep.subr.bf16.mxu0 0
      %619 = vmatpush2.bf16.msra.mxu0 0
      %620 = vmatprep.subr.bf16.mxu0 0
      %621 = vmatpush2.bf16.msra.mxu0 0
      %622 = vmatprep.subr.bf16.mxu0 0
      %623 = vmatpush2.bf16.msra.mxu0 0
      %624 = vmatprep.subr.bf16.mxu0 0
      %625 = vmatpush2.bf16.msra.mxu0 0
      %626 = vmatprep.subr.bf16.mxu0 0
      %627 = vmatpush2.bf16.msra.mxu0 0
      %628 = vmatprep.subr.bf16.mxu0 0
      %629 = vmatpush2.bf16.msra.mxu0 0
      %630 = vmatprep.subr.bf16.mxu0 0
      %631 = vmatpush2.bf16.msra.mxu0 0
      %632 = vmatprep.mubr.bf16.mxu0 0
      %633 = vmatmul.mubr.bf16.gmra.mxu0 %v547
      %v634 = vpop.f32.mrf.mxu0
      %v635 = vadd.f32 %v587, %v634
      %v636 = vpop.f32.mrf.mxu0
      %v637 = vpop.f32.mrf.mxu0
      %v638 = vadd.f32 %v590, %v637
      %v639 = vpop.f32.mrf.mxu0
      %640 = vmatprep.mubr.bf16.mxu0 0
      %641 = vmatmul.mubr.bf16.gmra.mxu0 %v550
      %v642 = vpop.f32.mrf.mxu0
      %v643 = vadd.f32 %v595, %v642
      %v644 = vpop.f32.mrf.mxu0
      %v645 = vpop.f32.mrf.mxu0
      %v646 = vpop.f32.mrf.mxu0
      %647 = vdwg.mxu0
      %v648 = vmul.f32 %v635, %v635
      %v649 = vmul.f32 %v638, %v638
      %v650 = vmul.f32 %v643, %v643
      %vm651 = vcmask 130048
      %v652 = vsel %vm651, %v648, 0.0
      %653 = vadd.xlane.f32.xlu0 %v652
      %v654 = vpop.xlane.xlu0 %653
      %v655 = vsel %vm651, %v649, 0.0
      %656 = vadd.xlane.f32.xlu0 %v655
      %v657 = vpop.xlane.xlu0 %656
      %v658 = vsel %vm651, %v650, 0.0
      %659 = vadd.xlane.f32.xlu0 %v658
      %v660 = vpop.xlane.xlu0 %659
      %v661 = vmax.f32 %v654, 1e-24
      %v662 = vmax.f32 %v657, 1e-24
      %v663 = vmax.f32 %v660, 1e-24
      %v664 = vrsqrt.pop %v661
      %v665 = vrsqrt.pop %v662
      %v666 = vrsqrt.pop %v663
      %v667 = vmul.f32 %v635, %v664
      %v668 = vmul.f32 %v638, %v665
      %v669 = vmul.f32 %v643, %v666
      %v670 = vpack.c.bf16 %v668, %v667
      %v671 = vpack.c.bf16 %v669, %v669
      %v674 = vunpack.c.l.b16 %v670
      %v675 = vunpack.c.h.b16 %v670
      %v676 = vunpack.c.l.b16 %v671
      %v677 = vpack.c.b16 %v674, %v674
      %v678 = vpack.c.b16 %v675, %v675
      %v679 = vpack.c.b16 %v676, %v676
      %vm683 = vcmask 125952
      %684 = vst.msk [vmem:[%s259] sm:$0xf] %vm683, %v677
      %685 = vst.msk [vmem:[%s259 + $0x4] sm:$0xf] %vm683, %v678
      %686 = vst.msk [vmem:[%s259 + $0x8] sm:$0xf] %vm683, %v679
      %v687 = vmul.f32 %v264, %v264
      %v688 = vmul.f32 %v265, %v265
      %v689 = vmul.f32 %v266, %v266
      %v690 = vmul.f32 %v267, %v267
      %vm691 = vcmask 261127
      %v692 = vsel %vm691, %v687, 0.0
      %693 = vadd.xlane.f32.xlu0 %v692
      %v694 = vpop.xlane.xlu0 %693
      %v695 = vsel %vm361, %v688, 0.0
      %696 = vadd.xlane.f32.xlu0 %v695
      %v697 = vpop.xlane.xlu0 %696
      %v698 = vsel %vm361, %v689, 0.0
      %699 = vadd.xlane.f32.xlu0 %v698
      %v700 = vpop.xlane.xlu0 %699
      %vm701 = vcmask 260096
      %v702 = vsel %vm701, %v690, 0.0
      %703 = vadd.xlane.f32.xlu0 %v702
      %v704 = vpop.xlane.xlu0 %703
      %v705 = vmax.f32 %v694, 1e-24
      %v706 = vmax.f32 %v697, 1e-24
      %v707 = vmax.f32 %v700, 1e-24
      %v708 = vmax.f32 %v704, 1e-24
      %v709 = vrsqrt.pop %v705
      %v710 = vrsqrt.pop %v706
      %v711 = vrsqrt.pop %v707
      %v712 = vrsqrt.pop %v708
      %v713 = vmul.f32 %v264, %v709
      %v714 = vmul.f32 %v265, %v710
      %v715 = vmul.f32 %v266, %v711
      %v716 = vmul.f32 %v267, %v712
      %v717 = vld [vmem:[%s3] sm:$0x1]
      %v718 = vld [vmem:[#allocation2] sm:$0x1]
      %720 = vset.pattern.permute.xlu0 0
      %721 = vperm.xlu0 %720, %v718
      %v722 = vpop.permute.xlu0 %721
      %v724 = vlaneseq
      %v725 = vshrl.u32 %v724, 7
      %v726 = vsub.s32 0, %v725
      %v727 = vrot.slane %v722, %v726
      %vm732 = vcmask 1040384
      %v733 = vrot.slane %v713, 7
      %v734 = vrot.slane %v714, 7
      %v735 = vsel %vm732, %v733, %v734
      %v736 = vrot.slane %v715, 7
      %v737 = vsel %vm732, %v734, %v736
      %v738 = vrot.slane %v716, 7
      %v739 = vsel %vm732, %v736, %v738
      %v741 = vsel %vm361, %v717, 0
      %v743 = vsel %vm361, %v735, 0
      %v745 = vsel %vm361, %v737, 0
      %v747 = vsel %vm361, %v739, 0
      %749 = vmatprep.subr.mxu0 0.0
      %750 = vmatpush1.xpose.msra.mxu0 0.0
      %751 = vmatprep.subr.mxu0 0.0
      %752 = vmatpush1.xpose.msra.mxu0 0.0
      %753 = vmatprep.subr.mxu0 0.0
      %754 = vmatpush1.xpose.msra.mxu0 0.0
      %755 = vmatprep.subr.mxu0 0.0
      %756 = vmatpush1.xpose.msra.mxu0 0.0
      %757 = vmatprep.subr.mxu0 0.0
      %758 = vmatpush1.xpose.msra.mxu0 0.0
      %759 = vmatprep.subr.mxu0 0.0
      %760 = vmatpush1.xpose.msra.mxu0 0.0
      %761 = vmatprep.subr.mxu0 0.0
      %762 = vmatpush1.xpose.msra.mxu0 0.0
      %763 = vmatprep.subr.mxu0 0.0
      %764 = vmatpush1.xpose.msra.mxu0 0.0
      %765 = vmatprep.subr.mxu0 0.0
      %766 = vmatpush1.xpose.msra.mxu0 0.0
      %767 = vmatprep.subr.mxu0 0.0
      %768 = vmatpush1.xpose.msra.mxu0 0.0
      %769 = vmatprep.subr.mxu0 0.0
      %770 = vmatpush1.xpose.msra.mxu0 0.0
      %771 = vmatprep.subr.mxu0 0.0
      %772 = vmatpush1.xpose.msra.mxu0 0.0
      %773 = vmatprep.subr.mxu0 0.0
      %774 = vmatpush1.xpose.msra.mxu0 0.0
      %775 = vmatprep.subr.mxu0 0.0
      %776 = vmatpush1.xpose.msra.mxu0 %v747
      %777 = vmatprep.subr.mxu0 0.0
      %778 = vmatpush1.xpose.msra.mxu0 %v745
      %779 = vmatprep.subr.mxu0 0.0
      %780 = vmatpush1.xpose.msra.mxu0 %v743
      %781 = vmatprep.subr.mxu0 0.0
      %782 = vmatpush2.xpose.msra.mxu0 0.0
      %783 = vmatprep.subr.mxu0 0.0
      %784 = vmatpush2.xpose.msra.mxu0 0.0
      %785 = vmatprep.subr.mxu0 0.0
      %786 = vmatpush2.xpose.msra.mxu0 0.0
      %787 = vmatprep.subr.mxu0 0.0
      %788 = vmatpush2.xpose.msra.mxu0 0.0
      %789 = vmatprep.subr.mxu0 0.0
      %790 = vmatpush2.xpose.msra.mxu0 0.0
      %791 = vmatprep.subr.mxu0 0.0
      %792 = vmatpush2.xpose.msra.mxu0 0.0
      %793 = vmatprep.subr.mxu0 0.0
      %794 = vmatpush2.xpose.msra.mxu0 0.0
      %795 = vmatprep.subr.mxu0 0.0
      %796 = vmatpush2.xpose.msra.mxu0 0.0
      %797 = vmatprep.subr.mxu0 0.0
      %798 = vmatpush2.xpose.msra.mxu0 0.0
      %799 = vmatprep.subr.mxu0 0.0
      %800 = vmatpush2.xpose.msra.mxu0 0.0
      %801 = vmatprep.subr.mxu0 0.0
      %802 = vmatpush2.xpose.msra.mxu0 0.0
      %803 = vmatprep.subr.mxu0 0.0
      %804 = vmatpush2.xpose.msra.mxu0 0.0
      %805 = vmatprep.subr.mxu0 0.0
      %806 = vmatpush2.xpose.msra.mxu0 0.0
      %807 = vmatprep.subr.mxu0 0.0
      %808 = vmatpush2.xpose.msra.mxu0 0.0
      %809 = vmatprep.subr.mxu0 0.0
      %810 = vmatpush2.xpose.msra.mxu0 0.0
      %811 = vmatprep.subr.mxu0 0.0
      %812 = vmatpush2.xpose.msra.mxu0 0.0
      %813 = vmatprep.mubr.f32.mxu0 0.0
      %814 = vmatmul.mubr.f32.gmra.mxu0 %v741
      %v815 = vpop.f32.mrf.mxu0
      %v816 = vadd.f32 %v727, %v815
      %v817 = vpop.f32.mrf.mxu0
      %818 = vdwg.mxu0
      %vm819 = vcmask 188416
      %820 = vst.msk [vmem:[%s262] sm:$0x1] %vm819, %v816
      %p821 = scmp.lt.s32.totalorder %s20, 1
      %s822 = scalar_select %p821, %s20, 1
      %s823 = smul.addr %s822, 3
      %s824 = smul.addr %s823, 4
      %s825 = scalar_lea.vmem %s5, %s824
      %p826 = scmp.lt.s32.totalorder %s20, 1
      %s827 = scalar_select %p826, %s20, 1
      %s828 = scalar_lea.vmem %s6, %s827
      // Predicated region
      $region41: #{clip_dinoiser_forward.2} parent=39 // pred_check
        %p829 = pneg %p148
      $region42: #{clip_dinoiser_forward.2} parent=39 // pred_check_branch
        %831 = sbr.rel (%p829) target = $region44
      $region43: #{clip_dinoiser_forward.2} parent=39 // pred_region
        _
      $region44: #{clip_dinoiser_forward.2} parent=39 // pred_fallthru
        _
      // Predicated region
      $region45: #{clip_dinoiser_forward.2} parent=39 // pred_check
        %p832 = pneg %p174
      $region46: #{clip_dinoiser_forward.2} parent=39 // pred_check_branch
        %834 = sbr.rel (%p832) target = $region48
      $region47: #{clip_dinoiser_forward.2} parent=39 // pred_region
        _
      $region48: #{clip_dinoiser_forward.2} parent=39 // pred_fallthru
        _
    $region40: #{clip_dinoiser_forward.2} parent=5 // pred_fallthru
      _
    %p835 = scmp.le.s32.totalorder 2, %s15
    // Predicated region
    $region49: #{clip_dinoiser_forward.2} parent=5 // pred_check
      %p836 = pneg %p835
    $region50: #{clip_dinoiser_forward.2} parent=5 // pred_check_branch
      %838 = sbr.rel (%p836) target = $region52
    $region51: #{clip_dinoiser_forward.2} parent=5 // pred_region
      %s839 = ssub.s32 %s15, 2
      // Predicated region
      $region53: #{clip_dinoiser_forward.2} parent=51 // pred_check
        %p840 = pneg %p154
      $region54: #{clip_dinoiser_forward.2} parent=51 // pred_check_branch
        %842 = sbr.rel (%p840) target = $region56
      $region55: #{clip_dinoiser_forward.2} parent=51 // pred_region
        %p843 = scmp.lt.s32.totalorder %s21, 1
        %s844 = scalar_select %p843, %s21, 1
        %s845 = smul.addr %s844, 3
        %s846 = smul.addr %s845, 4
        %s847 = scalar_lea.vmem %s5, %s846
      $region56: #{clip_dinoiser_forward.2} parent=51 // pred_fallthru
        _
      // Predicated region
      $region57: #{clip_dinoiser_forward.2} parent=51 // pred_check
        %p848 = pneg %p180
      $region58: #{clip_dinoiser_forward.2} parent=51 // pred_check_branch
        %850 = sbr.rel (%p848) target = $region60
      $region59: #{clip_dinoiser_forward.2} parent=51 // pred_region
        %p851 = scmp.lt.s32.totalorder %s21, 1
        %s852 = scalar_select %p851, %s21, 1
        %s853 = scalar_lea.vmem %s6, %s852
      $region60: #{clip_dinoiser_forward.2} parent=51 // pred_fallthru
        _
    $region52: #{clip_dinoiser_forward.2} parent=5 // pred_fallthru
      _
  $region6: #{clip_dinoiser_forward.2} parent=0 // loop_footer
    %s19 = sadd.s32 1, %s15
  $region7: #{clip_dinoiser_forward.2} parent=0 // loop_footer_branch
    %14 = sbr.rel target = $region3
  $region8: #{clip_dinoiser_forward.2} parent=0 // loop_exit
    _

</llo_original>
